<compile_context>
chip_gen: v7x
topology: tpu7x:2x2x1
jax: 0.10.0
libtpu: 0.0.40
codegen_flags: <defaults>
</compile_context>

<pallas_src>
import functools
import math

import jax
import jax.numpy as jnp
from jax import lax
from jax.experimental import pallas as pl
from jax.experimental.pallas import tpu as pltpu


# ---------------------------------------------------------------------------
# Fused MHA kernel: one grid step == (one batch element, one query tile).
# ---------------------------------------------------------------------------
def _mha_kernel(q_ref, k_ref, v_ref,
                wq_ref, wk_ref, wv_ref,
                bq_ref, bk_ref, bv_ref,
                wo_ref, bo_ref,
                *rest,
                nhead, head_dim, need_weights, mxu_dtype):
    """Blocks:
      q_ref        : (1, TL, E)     k_ref / v_ref : (1, S, E)
      wq/wk/wv_ref : (E, E) pre-transposed (x @ w), mxu dtype;
                     1/sqrt(Dh) folded into wq / bq
      bq/bk/bv_ref : (1, E) f32
      wo_ref       : (E, E) pre-transposed, mxu dtype   bo_ref : (1, E) f32
      out_ref      : (1, TL, E)     attnw_ref (optional) : (1, TL, S)
      ctx_sc       : (TL, E) f32    w_sc (optional) : (TL, S) f32
    """
    if need_weights:
        out_ref, attnw_ref, ctx_sc, w_sc = rest
    else:
        out_ref, ctx_sc = rest
        attnw_ref = None
        w_sc = None

    H, Dh = nhead, head_dim

    # Cast activations once for the MXU; accumulate in f32.
    x_q = q_ref[0].astype(mxu_dtype)                       # (TL, E)
    x_k = k_ref[0].astype(mxu_dtype)                       # (S, E)
    x_v = v_ref[0].astype(mxu_dtype)                       # (S, E)

    # Fused input projections (weights pre-transposed & pre-cast outside the
    # kernel; 1/sqrt(Dh) folded into wq/bq).  K/V projections are recomputed
    # per L tile; that trade keeps per-step VMEM bounded by TL, not L.
    q = (jnp.dot(x_q, wq_ref[...], preferred_element_type=jnp.float32)
         + bq_ref[...]).astype(mxu_dtype)                  # (TL, E)
    k = (jnp.dot(x_k, wk_ref[...], preferred_element_type=jnp.float32)
         + bk_ref[...]).astype(mxu_dtype)                  # (S, E)
    v = (jnp.dot(x_v, wv_ref[...], preferred_element_type=jnp.float32)
         + bv_ref[...]).astype(mxu_dtype)                  # (S, E)

    if need_weights:
        w_sc[...] = jnp.zeros_like(w_sc)

    # All heads of this (batch, L-tile) in one grid step; head split is a
    # static lane slice of the in-VMEM projection result.
    # TODO(synk): for large H switch to lax.fori_loop with pl.ds(h*Dh, Dh)
    #             starts to bound live ranges (verify spill% first).
    for h in range(H):
        lo = h * Dh
        qh = q[:, lo:lo + Dh]                              # (TL, Dh)
        kh = k[:, lo:lo + Dh]                              # (S, Dh)
        vh = v[:, lo:lo + Dh]                              # (S, Dh)

        # scores = qh @ kh^T (contraction on the Dh axis of both operands).
        s = lax.dot_general(qh, kh, (((1,), (1,)), ((), ())),
                            preferred_element_type=jnp.float32)   # (TL, S)
        m = jnp.max(s, axis=-1, keepdims=True)
        e = jnp.exp(s - m)                                 # f32 EUP
        denom = jnp.sum(e, axis=-1, keepdims=True)         # (TL, 1), >= 1

        # EUP reciprocal on the tiny (TL, 1) vector + one Newton step so the
        # result matches an exact divide to ~f32 round-off.
        inv = pl.reciprocal(denom, approx=True)
        inv = inv * (2.0 - denom * inv)
        p = e * inv                                        # softmax probs, f32

        if need_weights:
            w_sc[...] = w_sc[...] + p

        # Per-head context written into its lane slice of the ctx buffer;
        # the output projection is done ONCE after the loop (K=E matmul).
        ctx_h = jnp.dot(p.astype(mxu_dtype), vh,
                        preferred_element_type=jnp.float32)       # (TL, Dh)
        ctx_sc[:, lo:lo + Dh] = ctx_h

    # Single K=E output projection (full MXU occupancy).
    ctx = ctx_sc[...].astype(mxu_dtype)                    # (TL, E)
    out = jnp.dot(ctx, wo_ref[...], preferred_element_type=jnp.float32) \
        + bo_ref[...]
    out_ref[0] = out.astype(out_ref.dtype)

    if need_weights:
        attnw_ref[0] = (w_sc[...] * (1.0 / H)).astype(attnw_ref.dtype)


def _choose_l_tile(L, target=256):
    """Largest multiple-of-8 divisor of L that is <= target (or L itself)."""
    if L <= target:
        return L
    start = target - (target % 8)
    for t in range(start, 7, -8):
        if L % t == 0:
            return t
    return L


def _const_spec(block_shape):
    """Grid-invariant BlockSpec; single-buffered when pipeline_mode exists."""
    index_map = lambda b, l: (0, 0)
    try:
        return pl.BlockSpec(block_shape, index_map,
                            pipeline_mode=pl.Buffered(1))
    except TypeError:  # older jax without pipeline_mode / Buffered
        return pl.BlockSpec(block_shape, index_map)


def mha_forward_pallas(query, key, value,
                       w_q_t, w_k_t, w_v_t, b_q, b_k, b_v, w_o_t, b_o,
                       *, nhead, need_weights=True, mxu_dtype=jnp.bfloat16,
                       l_tile=256):
    """query: (B, L, E); key/value: (B, S, E).

    Returns (out, attn_weights) if need_weights else out.
    """
    B, L, E = query.shape
    S = key.shape[1]
    Dh = E // nhead
    TL = _choose_l_tile(L, l_tile)
    n_l = L // TL

    kernel = functools.partial(_mha_kernel, nhead=nhead, head_dim=Dh,
                               need_weights=need_weights, mxu_dtype=mxu_dtype)

    w_spec = _const_spec((E, E))
    b_spec = _const_spec((1, E))

    in_specs = [
        pl.BlockSpec((1, TL, E), lambda b, l: (b, l, 0)),   # query (L-tiled)
        pl.BlockSpec((1, S, E), lambda b, l: (b, 0, 0)),    # key
        pl.BlockSpec((1, S, E), lambda b, l: (b, 0, 0)),    # value
        w_spec, w_spec, w_spec,                             # w_q^T, w_k^T, w_v^T
        b_spec, b_spec, b_spec,                             # b_q, b_k, b_v
        w_spec, b_spec,                                     # w_o^T, b_o
    ]

    out_specs = [pl.BlockSpec((1, TL, E), lambda b, l: (b, l, 0))]
    out_shape = [jax.ShapeDtypeStruct((B, L, E), query.dtype)]
    scratch_shapes = [pltpu.VMEM((TL, E), jnp.float32)]     # ctx buffer
    if need_weights:
        out_specs.append(pl.BlockSpec((1, TL, S), lambda b, l: (b, l, 0)))
        out_shape.append(jax.ShapeDtypeStruct((B, L, S), query.dtype))
        scratch_shapes.append(pltpu.VMEM((TL, S), jnp.float32))

    # ---- VMEM budget (re-derived per tile; covers v5e 16 MiB scoped default
    # and v7x's 64 MiB physical). ----
    din = jnp.dtype(query.dtype).itemsize
    dm = jnp.dtype(mxu_dtype).itemsize
    f32 = 4
    est = (2 * TL * E * din + 2 * 2 * S * E * din     # double-buffered activations
           + 4 * E * E * dm + 4 * E * f32             # single-buffered weights/biases
           + 2 * TL * E * din                         # out block (double-buffered)
           + TL * E * f32                             # ctx scratch
           + (TL + 2 * S) * E * (f32 + dm)            # projected q/k/v values
           + 3 * TL * S * f32)                        # per-head scores/exp/probs
    if need_weights:
        est += 2 * TL * S * din + TL * S * f32
    vmem_limit = int(min(100 * 2**20, max(32 * 2**20, 2 * est)))

    # ---- Advisory cost hint for the XLA scheduler. ----
    flops = int(B * (4 * L * E * E                    # q proj + out proj
                     + n_l * 4 * S * E * E            # k/v proj (per L tile)
                     + 4 * L * S * E))                # QK^T + PV
    transcendentals = int(B * nhead * L * (S + 1))
    bytes_accessed = int(B * n_l * (TL * E + 2 * S * E) * din
                         + 4 * E * E * dm + 4 * E * f32
                         + B * L * E * din
                         + (B * L * S * din if need_weights else 0))

    grid_spec = pltpu.PrefetchScalarGridSpec(
        num_scalar_prefetch=0,
        grid=(B, n_l),
        in_specs=in_specs,
        out_specs=out_specs,
        scratch_shapes=scratch_shapes,
    )

    outs = pl.pallas_call(
        kernel,
        grid_spec=grid_spec,
        out_shape=out_shape,
        compiler_params=pltpu.CompilerParams(
            dimension_semantics=("parallel", "parallel"),
            vmem_limit_bytes=vmem_limit,
        ),
        cost_estimate=pl.CostEstimate(
            flops=flops,
            transcendentals=transcendentals,
            bytes_accessed=bytes_accessed,
        ),
    )(query, key, value, w_q_t, w_k_t, w_v_t, b_q, b_k, b_v, w_o_t, b_o)

    if need_weights:
        return outs[0], outs[1]
    return outs[0]


# ---------------------------------------------------------------------------
# Module wrapper
# ---------------------------------------------------------------------------
class MultiheadAttentionPallas:
    def __init__(self, nhead, d_model, key, dropout=0.0, bias=True,
                 add_bias_kv=False, add_zero_attn=False, kdim=None, vdim=None,
                 mxu_dtype=jnp.bfloat16):
        if dropout != 0.0 or add_bias_kv or add_zero_attn or not bias \
                or kdim is not None or vdim is not None:
            # TODO(synk): only the default nn.MultiheadAttention config is
            #             implemented in the Pallas kernel.
            raise NotImplementedError(
                "Only dropout=0, bias=True, no add_bias_kv/add_zero_attn, "
                "kdim=vdim=d_model is supported.")
        assert d_model % nhead == 0
        self.nhead = nhead
        self.d_model = d_model
        self.head_dim = d_model // nhead
        self.mxu_dtype = mxu_dtype

        k1, k2, k3, k4 = jax.random.split(key, 4)
        # in_proj_weight: xavier_uniform_ like torch nn.MultiheadAttention.
        lim = math.sqrt(6.0 / (3 * d_model + d_model))
        self.in_proj_weight = jax.random.uniform(
            k1, (3 * d_model, d_model), jnp.float32, -lim, lim)
        lim_o = math.sqrt(1.0 / d_model)
        self.out_proj_weight = jax.random.uniform(
            k2, (d_model, d_model), jnp.float32, -lim_o, lim_o)
        # torch inits these to zeros; randomize slightly so the bias-add path
        # is actually exercised by the self-test.
        self.in_proj_bias = 0.1 * jax.random.normal(
            k3, (3 * d_model,), jnp.float32)
        self.out_proj_bias = 0.1 * jax.random.normal(
            k4, (d_model,), jnp.float32)

        self._prepare_kernel_params()

    def _prepare_kernel_params(self):
        """One-time layout plumbing outside the hot path: pre-transposed
        (x @ W) weights cast to the MXU dtype, 1/sqrt(Dh) folded into W_q/b_q,
        biases kept in f32 (added after the f32-accumulated matmul)."""
        E = self.d_model
        dt = self.mxu_dtype
        scale = 1.0 / math.sqrt(self.head_dim)
        w_q, w_k, w_v = jnp.split(self.in_proj_weight, 3, axis=0)
        b_q, b_k, b_v = jnp.split(self.in_proj_bias, 3, axis=0)
        self._w_q_t = (w_q.T * scale).astype(dt)
        self._w_k_t = w_k.T.astype(dt)
        self._w_v_t = w_v.T.astype(dt)
        self._b_q = (b_q * scale).reshape(1, E).astype(jnp.float32)
        self._b_k = b_k.reshape(1, E).astype(jnp.float32)
        self._b_v = b_v.reshape(1, E).astype(jnp.float32)
        self._w_o_t = self.out_proj_weight.T.astype(dt)
        self._b_o = self.out_proj_bias.reshape(1, E).astype(jnp.float32)

    def __call__(self, query, key, value, attn_mask=None,
                 key_padding_mask=None, return_attn_weights=True,
                 pos_embs=None):
        # query: (B, L, E); key/value: (B, S, E)
        if attn_mask is not None or key_padding_mask is not None \
                or pos_embs is not None:
            # TODO(synk): masks / positional-embedding attention biases are
            #             not implemented in the Pallas kernel.
            raise NotImplementedError(
                "attn_mask / key_padding_mask / pos_embs are not supported.")
        return mha_forward_pallas(
            query, key, value,
            self._w_q_t, self._w_k_t, self._w_v_t,
            self._b_q, self._b_k, self._b_v,
            self._w_o_t, self._b_o,
            nhead=self.nhead,
            need_weights=bool(return_attn_weights),
            mxu_dtype=self.mxu_dtype)

    # pure-JAX reference (f32) for correctness checking
    def reference(self, query, key, value):
        B, L, E = query.shape
        S = key.shape[1]
        H, Dh = self.nhead, self.head_dim
        w_q, w_k, w_v = jnp.split(self.in_proj_weight, 3, axis=0)
        b_q, b_k, b_v = jnp.split(self.in_proj_bias, 3, axis=0)
        q = query @ w_q.T + b_q
        k = key @ w_k.T + b_k
        v = value @ w_v.T + b_v
        q = q.reshape(B, L, H, Dh).transpose(0, 2, 1, 3) / math.sqrt(Dh)
        k = k.reshape(B, S, H, Dh).transpose(0, 2, 1, 3)
        v = v.reshape(B, S, H, Dh).transpose(0, 2, 1, 3)
        s = jnp.einsum("bhld,bhsd->bhls", q, k)
        p = jax.nn.softmax(s, axis=-1)
        ctx = jnp.einsum("bhls,bhsd->bhld", p, v)
        ctx = ctx.transpose(0, 2, 1, 3).reshape(B, L, E)
        out = ctx @ self.out_proj_weight.T + self.out_proj_bias
        return out, p.mean(axis=1)


# ---------------------------------------------------------------------------
if __name__ == "__main__":
    B, L, S, E, H = 2, 16, 8, 64, 4

    key = jax.random.PRNGKey(0)
    k_mod, k_q, k_k, k_v = jax.random.split(key, 4)

    query = jax.random.normal(k_q, (B, L, E), jnp.float32)
    keyt = jax.random.normal(k_k, (B, S, E), jnp.float32)
    value = jax.random.normal(k_v, (B, S, E), jnp.float32)

    # --- f32-MXU configuration: tight check against the pure-JAX reference.
    mha_f32 = MultiheadAttentionPallas(nhead=H, d_model=E, key=k_mod,
                                       mxu_dtype=jnp.float32)
    out32, w32 = mha_f32(query, keyt, value)
    out32 = jax.block_until_ready(out32)
    w32 = jax.block_until_ready(w32)
    ref_out, ref_w = mha_f32.reference(query, keyt, value)
    assert out32.shape == (B, L, E) and w32.shape == (B, L, S)
    assert jnp.allclose(out32, ref_out, atol=1e-4, rtol=1e-4)
    assert jnp.allclose(w32, ref_w, atol=1e-4, rtol=1e-4)

    # --- bf16-MXU configuration (performance path): looser tolerance.
    mha_bf16 = MultiheadAttentionPallas(nhead=H, d_model=E, key=k_mod,
                                        mxu_dtype=jnp.bfloat16)
    out16, w16 = mha_bf16(query, keyt, value)
    out16 = jax.block_until_ready(out16)
    w16 = jax.block_until_ready(w16)
    assert jnp.allclose(out16, ref_out, atol=5e-2, rtol=5e-2)
    assert jnp.allclose(w16, ref_w, atol=2e-2, rtol=2e-2)

    # --- need_weights=False fast path (no (B, L, S) writeback).
    out_nw = mha_bf16(query, keyt, value, return_attn_weights=False)
    out_nw = jax.block_until_ready(out_nw)
    assert out_nw.shape == (B, L, E)
    assert jnp.allclose(out_nw, out16, atol=1e-5, rtol=1e-5)

    print("KERNEL_OK")
</pallas_src>

<mosaic_0001>
module attributes {stable_mosaic.version = 11 : i64} {
  func.func @_mha_kernel(%arg0: i32, %arg1: i32, %arg2: memref<1x16x64xf32, #tpu.memory_space<vmem>>, %arg3: memref<1x8x64xf32, #tpu.memory_space<vmem>>, %arg4: memref<1x8x64xf32, #tpu.memory_space<vmem>>, %arg5: memref<64x64xf32, #tpu.memory_space<vmem>>, %arg6: memref<64x64xf32, #tpu.memory_space<vmem>>, %arg7: memref<64x64xf32, #tpu.memory_space<vmem>>, %arg8: memref<1x64xf32, #tpu.memory_space<vmem>>, %arg9: memref<1x64xf32, #tpu.memory_space<vmem>>, %arg10: memref<1x64xf32, #tpu.memory_space<vmem>>, %arg11: memref<64x64xf32, #tpu.memory_space<vmem>>, %arg12: memref<1x64xf32, #tpu.memory_space<vmem>>, %arg13: memref<1x16x64xf32, #tpu.memory_space<vmem>>, %arg14: memref<1x16x8xf32, #tpu.memory_space<vmem>>, %arg15: memref<16x64xf32, #tpu.memory_space<vmem>>, %arg16: memref<16x8xf32, #tpu.memory_space<vmem>>) attributes {dimension_semantics = [#tpu.dimension_semantics<parallel>, #tpu.dimension_semantics<parallel>], iteration_bounds = array<i64: 2, 1>, scalar_prefetch = 0 : i64, scratch_operands = 2 : i64, tpu.core_type = #tpu.core_type<tc>, window_params = [{transform_indices = @transform_0, window_bounds = array<i64: 1, 16, 64>}, {transform_indices = @transform_1, window_bounds = array<i64: 1, 8, 64>}, {transform_indices = @transform_2, window_bounds = array<i64: 1, 8, 64>}, {pipeline_mode = #tpu.pipeline_mode<synchronous>, transform_indices = @transform_3, window_bounds = array<i64: 64, 64>}, {pipeline_mode = #tpu.pipeline_mode<synchronous>, transform_indices = @transform_4, window_bounds = array<i64: 64, 64>}, {pipeline_mode = #tpu.pipeline_mode<synchronous>, transform_indices = @transform_5, window_bounds = array<i64: 64, 64>}, {pipeline_mode = #tpu.pipeline_mode<synchronous>, transform_indices = @transform_6, window_bounds = array<i64: 1, 64>}, {pipeline_mode = #tpu.pipeline_mode<synchronous>, transform_indices = @transform_7, window_bounds = array<i64: 1, 64>}, {pipeline_mode = #tpu.pipeline_mode<synchronous>, transform_indices = @transform_8, window_bounds = array<i64: 1, 64>}, {pipeline_mode = #tpu.pipeline_mode<synchronous>, transform_indices = @transform_9, window_bounds = array<i64: 64, 64>}, {pipeline_mode = #tpu.pipeline_mode<synchronous>, transform_indices = @transform_10, window_bounds = array<i64: 1, 64>}, {transform_indices = @transform_11, window_bounds = array<i64: 1, 16, 64>}, {transform_indices = @transform_12, window_bounds = array<i64: 1, 16, 8>}]} {
    %c0 = arith.constant 0 : index
    %c0_0 = arith.constant 0 : index
    %c0_1 = arith.constant 0 : index
    %0 = vector.load %arg2[%c0, %c0_0, %c0_1] : memref<1x16x64xf32, #tpu.memory_space<vmem>>, vector<1x16x64xf32>
    %1 = vector.shape_cast %0 : vector<1x16x64xf32> to vector<16x64xf32>
    %c0_2 = arith.constant 0 : index
    %c0_3 = arith.constant 0 : index
    %c0_4 = arith.constant 0 : index
    %2 = vector.load %arg3[%c0_2, %c0_3, %c0_4] : memref<1x8x64xf32, #tpu.memory_space<vmem>>, vector<1x8x64xf32>
    %3 = vector.shape_cast %2 : vector<1x8x64xf32> to vector<8x64xf32>
    %c0_5 = arith.constant 0 : index
    %c0_6 = arith.constant 0 : index
    %c0_7 = arith.constant 0 : index
    %4 = vector.load %arg4[%c0_5, %c0_6, %c0_7] : memref<1x8x64xf32, #tpu.memory_space<vmem>>, vector<1x8x64xf32>
    %5 = vector.shape_cast %4 : vector<1x8x64xf32> to vector<8x64xf32>
    %c0_8 = arith.constant 0 : index
    %c0_9 = arith.constant 0 : index
    %6 = vector.load %arg5[%c0_8, %c0_9] : memref<64x64xf32, #tpu.memory_space<vmem>>, vector<64x64xf32>
    %cst = arith.constant dense<0.000000e+00> : vector<16x64xf32>
    %7 = tpu.matmul %1, %6, %cst {dimension_numbers = #tpu.dot_dimension_numbers<[1], [0], [0], [1], [0, 0, 1, 1], [], []>} : vector<16x64xf32>, vector<64x64xf32>, vector<16x64xf32> -> vector<16x64xf32>
    %c0_10 = arith.constant 0 : index
    %c0_11 = arith.constant 0 : index
    %8 = vector.load %arg8[%c0_10, %c0_11] : memref<1x64xf32, #tpu.memory_space<vmem>>, vector<1x64xf32>
    %9 = vector.broadcast %8 : vector<1x64xf32> to vector<16x64xf32>
    %10 = arith.addf %7, %9 : vector<16x64xf32>
    %c0_12 = arith.constant 0 : index
    %c0_13 = arith.constant 0 : index
    %11 = vector.load %arg6[%c0_12, %c0_13] : memref<64x64xf32, #tpu.memory_space<vmem>>, vector<64x64xf32>
    %cst_14 = arith.constant dense<0.000000e+00> : vector<8x64xf32>
    %12 = tpu.matmul %3, %11, %cst_14 {dimension_numbers = #tpu.dot_dimension_numbers<[1], [0], [0], [1], [0, 0, 1, 1], [], []>} : vector<8x64xf32>, vector<64x64xf32>, vector<8x64xf32> -> vector<8x64xf32>
    %c0_15 = arith.constant 0 : index
    %c0_16 = arith.constant 0 : index
    %13 = vector.load %arg9[%c0_15, %c0_16] : memref<1x64xf32, #tpu.memory_space<vmem>>, vector<1x64xf32>
    %14 = vector.broadcast %13 : vector<1x64xf32> to vector<8x64xf32>
    %15 = arith.addf %12, %14 : vector<8x64xf32>
    %c0_17 = arith.constant 0 : index
    %c0_18 = arith.constant 0 : index
    %16 = vector.load %arg7[%c0_17, %c0_18] : memref<64x64xf32, #tpu.memory_space<vmem>>, vector<64x64xf32>
    %cst_19 = arith.constant dense<0.000000e+00> : vector<8x64xf32>
    %17 = tpu.matmul %5, %16, %cst_19 {dimension_numbers = #tpu.dot_dimension_numbers<[1], [0], [0], [1], [0, 0, 1, 1], [], []>} : vector<8x64xf32>, vector<64x64xf32>, vector<8x64xf32> -> vector<8x64xf32>
    %c0_20 = arith.constant 0 : index
    %c0_21 = arith.constant 0 : index
    %18 = vector.load %arg10[%c0_20, %c0_21] : memref<1x64xf32, #tpu.memory_space<vmem>>, vector<1x64xf32>
    %19 = vector.broadcast %18 : vector<1x64xf32> to vector<8x64xf32>
    %20 = arith.addf %17, %19 : vector<8x64xf32>
    %cst_22 = arith.constant 0.000000e+00 : f32
    %21 = vector.broadcast %cst_22 : f32 to vector<16x8xf32>
    %c0_23 = arith.constant 0 : index
    %c0_24 = arith.constant 0 : index
    %22 = vector.load %arg16[%c0_23, %c0_24] : memref<16x8xf32, #tpu.memory_space<vmem>>, vector<16x8xf32>
    tpu.vector_store %arg16[%c0_23, %c0_24], %21 {strides = array<i32>} : memref<16x8xf32, #tpu.memory_space<vmem>>, vector<16x8xf32>,
    %23 = vector.extract_strided_slice %10 {offsets = [0, 0], sizes = [16, 16], strides = [1, 1]} : vector<16x64xf32> to vector<16x16xf32>
    %24 = vector.extract_strided_slice %15 {offsets = [0, 0], sizes = [8, 16], strides = [1, 1]} : vector<8x64xf32> to vector<8x16xf32>
    %25 = vector.extract_strided_slice %20 {offsets = [0, 0], sizes = [8, 16], strides = [1, 1]} : vector<8x64xf32> to vector<8x16xf32>
    %cst_25 = arith.constant dense<0.000000e+00> : vector<16x8xf32>
    %26 = tpu.matmul %23, %24, %cst_25 {dimension_numbers = #tpu.dot_dimension_numbers<[1], [1], [0], [0], [0, 0, 1, 0], [], []>} : vector<16x16xf32>, vector<8x16xf32>, vector<16x8xf32> -> vector<16x8xf32>
    %cst_26 = arith.constant dense<0xFF800000> : vector<16xf32>
    %27 = vector.multi_reduction <maximumf>, %26, %cst_26 [1] : vector<16x8xf32> to vector<16xf32>
    %28 = vector.shape_cast %27 : vector<16xf32> to vector<16x1xf32>
    %29 = vector.broadcast %28 : vector<16x1xf32> to vector<16x8xf32>
    %30 = arith.subf %26, %29 : vector<16x8xf32>
    %31 = math.exp %30 : vector<16x8xf32>
    %cst_27 = arith.constant dense<0.000000e+00> : vector<16xf32>
    %32 = vector.multi_reduction <add>, %31, %cst_27 [1] : vector<16x8xf32> to vector<16xf32>
    %33 = vector.shape_cast %32 : vector<16xf32> to vector<16x1xf32>
    %34 = tpu.reciprocal %33 {approx = true} : vector<16x1xf32> -> vector<16x1xf32>
    %35 = arith.mulf %33, %34 : vector<16x1xf32>
    %cst_28 = arith.constant 2.000000e+00 : f32
    %36 = vector.broadcast %cst_28 : f32 to vector<16x1xf32>
    %37 = arith.subf %36, %35 : vector<16x1xf32>
    %38 = arith.mulf %34, %37 : vector<16x1xf32>
    %39 = vector.broadcast %38 : vector<16x1xf32> to vector<16x8xf32>
    %40 = arith.mulf %31, %39 : vector<16x8xf32>
    %c0_29 = arith.constant 0 : index
    %c0_30 = arith.constant 0 : index
    %41 = vector.load %arg16[%c0_29, %c0_30] : memref<16x8xf32, #tpu.memory_space<vmem>>, vector<16x8xf32>
    %42 = arith.addf %41, %40 : vector<16x8xf32>
    %c0_31 = arith.constant 0 : index
    %c0_32 = arith.constant 0 : index
    %43 = vector.load %arg16[%c0_31, %c0_32] : memref<16x8xf32, #tpu.memory_space<vmem>>, vector<16x8xf32>
    tpu.vector_store %arg16[%c0_31, %c0_32], %42 {strides = array<i32>} : memref<16x8xf32, #tpu.memory_space<vmem>>, vector<16x8xf32>,
    %cst_33 = arith.constant dense<0.000000e+00> : vector<16x16xf32>
    %44 = tpu.matmul %40, %25, %cst_33 {dimension_numbers = #tpu.dot_dimension_numbers<[1], [0], [0], [1], [0, 0, 1, 1], [], []>} : vector<16x8xf32>, vector<8x16xf32>, vector<16x16xf32> -> vector<16x16xf32>
    %c0_34 = arith.constant 0 : index
    %c0_35 = arith.constant 0 : index
    %45 = vector.load %arg15[%c0_34, %c0_35] : memref<16x64xf32, #tpu.memory_space<vmem>>, vector<16x16xf32>
    tpu.vector_store %arg15[%c0_34, %c0_35], %44 {strides = array<i32>} : memref<16x64xf32, #tpu.memory_space<vmem>>, vector<16x16xf32>,
    %46 = vector.extract_strided_slice %10 {offsets = [0, 16], sizes = [16, 16], strides = [1, 1]} : vector<16x64xf32> to vector<16x16xf32>
    %47 = vector.extract_strided_slice %15 {offsets = [0, 16], sizes = [8, 16], strides = [1, 1]} : vector<8x64xf32> to vector<8x16xf32>
    %48 = vector.extract_strided_slice %20 {offsets = [0, 16], sizes = [8, 16], strides = [1, 1]} : vector<8x64xf32> to vector<8x16xf32>
    %cst_36 = arith.constant dense<0.000000e+00> : vector<16x8xf32>
    %49 = tpu.matmul %46, %47, %cst_36 {dimension_numbers = #tpu.dot_dimension_numbers<[1], [1], [0], [0], [0, 0, 1, 0], [], []>} : vector<16x16xf32>, vector<8x16xf32>, vector<16x8xf32> -> vector<16x8xf32>
    %cst_37 = arith.constant dense<0xFF800000> : vector<16xf32>
    %50 = vector.multi_reduction <maximumf>, %49, %cst_37 [1] : vector<16x8xf32> to vector<16xf32>
    %51 = vector.shape_cast %50 : vector<16xf32> to vector<16x1xf32>
    %52 = vector.broadcast %51 : vector<16x1xf32> to vector<16x8xf32>
    %53 = arith.subf %49, %52 : vector<16x8xf32>
    %54 = math.exp %53 : vector<16x8xf32>
    %cst_38 = arith.constant dense<0.000000e+00> : vector<16xf32>
    %55 = vector.multi_reduction <add>, %54, %cst_38 [1] : vector<16x8xf32> to vector<16xf32>
    %56 = vector.shape_cast %55 : vector<16xf32> to vector<16x1xf32>
    %57 = tpu.reciprocal %56 {approx = true} : vector<16x1xf32> -> vector<16x1xf32>
    %58 = arith.mulf %56, %57 : vector<16x1xf32>
    %cst_39 = arith.constant 2.000000e+00 : f32
    %59 = vector.broadcast %cst_39 : f32 to vector<16x1xf32>
    %60 = arith.subf %59, %58 : vector<16x1xf32>
    %61 = arith.mulf %57, %60 : vector<16x1xf32>
    %62 = vector.broadcast %61 : vector<16x1xf32> to vector<16x8xf32>
    %63 = arith.mulf %54, %62 : vector<16x8xf32>
    %c0_40 = arith.constant 0 : index
    %c0_41 = arith.constant 0 : index
    %64 = vector.load %arg16[%c0_40, %c0_41] : memref<16x8xf32, #tpu.memory_space<vmem>>, vector<16x8xf32>
    %65 = arith.addf %64, %63 : vector<16x8xf32>
    %c0_42 = arith.constant 0 : index
    %c0_43 = arith.constant 0 : index
    %66 = vector.load %arg16[%c0_42, %c0_43] : memref<16x8xf32, #tpu.memory_space<vmem>>, vector<16x8xf32>
    tpu.vector_store %arg16[%c0_42, %c0_43], %65 {strides = array<i32>} : memref<16x8xf32, #tpu.memory_space<vmem>>, vector<16x8xf32>,
    %cst_44 = arith.constant dense<0.000000e+00> : vector<16x16xf32>
    %67 = tpu.matmul %63, %48, %cst_44 {dimension_numbers = #tpu.dot_dimension_numbers<[1], [0], [0], [1], [0, 0, 1, 1], [], []>} : vector<16x8xf32>, vector<8x16xf32>, vector<16x16xf32> -> vector<16x16xf32>
    %c0_45 = arith.constant 0 : index
    %c16 = arith.constant 16 : index
    %68 = vector.load %arg15[%c0_45, %c16] : memref<16x64xf32, #tpu.memory_space<vmem>>, vector<16x16xf32>
    tpu.vector_store %arg15[%c0_45, %c16], %67 {strides = array<i32>} : memref<16x64xf32, #tpu.memory_space<vmem>>, vector<16x16xf32>,
    %69 = vector.extract_strided_slice %10 {offsets = [0, 32], sizes = [16, 16], strides = [1, 1]} : vector<16x64xf32> to vector<16x16xf32>
    %70 = vector.extract_strided_slice %15 {offsets = [0, 32], sizes = [8, 16], strides = [1, 1]} : vector<8x64xf32> to vector<8x16xf32>
    %71 = vector.extract_strided_slice %20 {offsets = [0, 32], sizes = [8, 16], strides = [1, 1]} : vector<8x64xf32> to vector<8x16xf32>
    %cst_46 = arith.constant dense<0.000000e+00> : vector<16x8xf32>
    %72 = tpu.matmul %69, %70, %cst_46 {dimension_numbers = #tpu.dot_dimension_numbers<[1], [1], [0], [0], [0, 0, 1, 0], [], []>} : vector<16x16xf32>, vector<8x16xf32>, vector<16x8xf32> -> vector<16x8xf32>
    %cst_47 = arith.constant dense<0xFF800000> : vector<16xf32>
    %73 = vector.multi_reduction <maximumf>, %72, %cst_47 [1] : vector<16x8xf32> to vector<16xf32>
    %74 = vector.shape_cast %73 : vector<16xf32> to vector<16x1xf32>
    %75 = vector.broadcast %74 : vector<16x1xf32> to vector<16x8xf32>
    %76 = arith.subf %72, %75 : vector<16x8xf32>
    %77 = math.exp %76 : vector<16x8xf32>
    %cst_48 = arith.constant dense<0.000000e+00> : vector<16xf32>
    %78 = vector.multi_reduction <add>, %77, %cst_48 [1] : vector<16x8xf32> to vector<16xf32>
    %79 = vector.shape_cast %78 : vector<16xf32> to vector<16x1xf32>
    %80 = tpu.reciprocal %79 {approx = true} : vector<16x1xf32> -> vector<16x1xf32>
    %81 = arith.mulf %79, %80 : vector<16x1xf32>
    %cst_49 = arith.constant 2.000000e+00 : f32
    %82 = vector.broadcast %cst_49 : f32 to vector<16x1xf32>
    %83 = arith.subf %82, %81 : vector<16x1xf32>
    %84 = arith.mulf %80, %83 : vector<16x1xf32>
    %85 = vector.broadcast %84 : vector<16x1xf32> to vector<16x8xf32>
    %86 = arith.mulf %77, %85 : vector<16x8xf32>
    %c0_50 = arith.constant 0 : index
    %c0_51 = arith.constant 0 : index
    %87 = vector.load %arg16[%c0_50, %c0_51] : memref<16x8xf32, #tpu.memory_space<vmem>>, vector<16x8xf32>
    %88 = arith.addf %87, %86 : vector<16x8xf32>
    %c0_52 = arith.constant 0 : index
    %c0_53 = arith.constant 0 : index
    %89 = vector.load %arg16[%c0_52, %c0_53] : memref<16x8xf32, #tpu.memory_space<vmem>>, vector<16x8xf32>
    tpu.vector_store %arg16[%c0_52, %c0_53], %88 {strides = array<i32>} : memref<16x8xf32, #tpu.memory_space<vmem>>, vector<16x8xf32>,
    %cst_54 = arith.constant dense<0.000000e+00> : vector<16x16xf32>
    %90 = tpu.matmul %86, %71, %cst_54 {dimension_numbers = #tpu.dot_dimension_numbers<[1], [0], [0], [1], [0, 0, 1, 1], [], []>} : vector<16x8xf32>, vector<8x16xf32>, vector<16x16xf32> -> vector<16x16xf32>
    %c0_55 = arith.constant 0 : index
    %c32 = arith.constant 32 : index
    %91 = vector.load %arg15[%c0_55, %c32] : memref<16x64xf32, #tpu.memory_space<vmem>>, vector<16x16xf32>
    tpu.vector_store %arg15[%c0_55, %c32], %90 {strides = array<i32>} : memref<16x64xf32, #tpu.memory_space<vmem>>, vector<16x16xf32>,
    %92 = vector.extract_strided_slice %10 {offsets = [0, 48], sizes = [16, 16], strides = [1, 1]} : vector<16x64xf32> to vector<16x16xf32>
    %93 = vector.extract_strided_slice %15 {offsets = [0, 48], sizes = [8, 16], strides = [1, 1]} : vector<8x64xf32> to vector<8x16xf32>
    %94 = vector.extract_strided_slice %20 {offsets = [0, 48], sizes = [8, 16], strides = [1, 1]} : vector<8x64xf32> to vector<8x16xf32>
    %cst_56 = arith.constant dense<0.000000e+00> : vector<16x8xf32>
    %95 = tpu.matmul %92, %93, %cst_56 {dimension_numbers = #tpu.dot_dimension_numbers<[1], [1], [0], [0], [0, 0, 1, 0], [], []>} : vector<16x16xf32>, vector<8x16xf32>, vector<16x8xf32> -> vector<16x8xf32>
    %cst_57 = arith.constant dense<0xFF800000> : vector<16xf32>
    %96 = vector.multi_reduction <maximumf>, %95, %cst_57 [1] : vector<16x8xf32> to vector<16xf32>
    %97 = vector.shape_cast %96 : vector<16xf32> to vector<16x1xf32>
    %98 = vector.broadcast %97 : vector<16x1xf32> to vector<16x8xf32>
    %99 = arith.subf %95, %98 : vector<16x8xf32>
    %100 = math.exp %99 : vector<16x8xf32>
    %cst_58 = arith.constant dense<0.000000e+00> : vector<16xf32>
    %101 = vector.multi_reduction <add>, %100, %cst_58 [1] : vector<16x8xf32> to vector<16xf32>
    %102 = vector.shape_cast %101 : vector<16xf32> to vector<16x1xf32>
    %103 = tpu.reciprocal %102 {approx = true} : vector<16x1xf32> -> vector<16x1xf32>
    %104 = arith.mulf %102, %103 : vector<16x1xf32>
    %cst_59 = arith.constant 2.000000e+00 : f32
    %105 = vector.broadcast %cst_59 : f32 to vector<16x1xf32>
    %106 = arith.subf %105, %104 : vector<16x1xf32>
    %107 = arith.mulf %103, %106 : vector<16x1xf32>
    %108 = vector.broadcast %107 : vector<16x1xf32> to vector<16x8xf32>
    %109 = arith.mulf %100, %108 : vector<16x8xf32>
    %c0_60 = arith.constant 0 : index
    %c0_61 = arith.constant 0 : index
    %110 = vector.load %arg16[%c0_60, %c0_61] : memref<16x8xf32, #tpu.memory_space<vmem>>, vector<16x8xf32>
    %111 = arith.addf %110, %109 : vector<16x8xf32>
    %c0_62 = arith.constant 0 : index
    %c0_63 = arith.constant 0 : index
    %112 = vector.load %arg16[%c0_62, %c0_63] : memref<16x8xf32, #tpu.memory_space<vmem>>, vector<16x8xf32>
    tpu.vector_store %arg16[%c0_62, %c0_63], %111 {strides = array<i32>} : memref<16x8xf32, #tpu.memory_space<vmem>>, vector<16x8xf32>,
    %cst_64 = arith.constant dense<0.000000e+00> : vector<16x16xf32>
    %113 = tpu.matmul %109, %94, %cst_64 {dimension_numbers = #tpu.dot_dimension_numbers<[1], [0], [0], [1], [0, 0, 1, 1], [], []>} : vector<16x8xf32>, vector<8x16xf32>, vector<16x16xf32> -> vector<16x16xf32>
    %c0_65 = arith.constant 0 : index
    %c48 = arith.constant 48 : index
    %114 = vector.load %arg15[%c0_65, %c48] : memref<16x64xf32, #tpu.memory_space<vmem>>, vector<16x16xf32>
    tpu.vector_store %arg15[%c0_65, %c48], %113 {strides = array<i32>} : memref<16x64xf32, #tpu.memory_space<vmem>>, vector<16x16xf32>,
    %c0_66 = arith.constant 0 : index
    %c0_67 = arith.constant 0 : index
    %115 = vector.load %arg15[%c0_66, %c0_67] : memref<16x64xf32, #tpu.memory_space<vmem>>, vector<16x64xf32>
    %c0_68 = arith.constant 0 : index
    %c0_69 = arith.constant 0 : index
    %116 = vector.load %arg11[%c0_68, %c0_69] : memref<64x64xf32, #tpu.memory_space<vmem>>, vector<64x64xf32>
    %cst_70 = arith.constant dense<0.000000e+00> : vector<16x64xf32>
    %117 = tpu.matmul %115, %116, %cst_70 {dimension_numbers = #tpu.dot_dimension_numbers<[1], [0], [0], [1], [0, 0, 1, 1], [], []>} : vector<16x64xf32>, vector<64x64xf32>, vector<16x64xf32> -> vector<16x64xf32>
    %c0_71 = arith.constant 0 : index
    %c0_72 = arith.constant 0 : index
    %118 = vector.load %arg12[%c0_71, %c0_72] : memref<1x64xf32, #tpu.memory_space<vmem>>, vector<1x64xf32>
    %119 = vector.broadcast %118 : vector<1x64xf32> to vector<16x64xf32>
    %120 = arith.addf %117, %119 : vector<16x64xf32>
    %c0_73 = arith.constant 0 : index
    %c0_74 = arith.constant 0 : index
    %c0_75 = arith.constant 0 : index
    %121 = vector.load %arg13[%c0_73, %c0_74, %c0_75] : memref<1x16x64xf32, #tpu.memory_space<vmem>>, vector<1x16x64xf32>
    %122 = vector.shape_cast %121 : vector<1x16x64xf32> to vector<16x64xf32>
    %123 = vector.shape_cast %120 : vector<16x64xf32> to vector<1x16x64xf32>
    tpu.vector_store %arg13[%c0_73, %c0_74, %c0_75], %123 {strides = array<i32>} : memref<1x16x64xf32, #tpu.memory_space<vmem>>, vector<1x16x64xf32>,
    %c0_76 = arith.constant 0 : index
    %c0_77 = arith.constant 0 : index
    %124 = vector.load %arg16[%c0_76, %c0_77] : memref<16x8xf32, #tpu.memory_space<vmem>>, vector<16x8xf32>
    %cst_78 = arith.constant 2.500000e-01 : f32
    %125 = vector.broadcast %cst_78 : f32 to vector<16x8xf32>
    %126 = arith.mulf %124, %125 : vector<16x8xf32>
    %c0_79 = arith.constant 0 : index
    %c0_80 = arith.constant 0 : index
    %c0_81 = arith.constant 0 : index
    %127 = vector.load %arg14[%c0_79, %c0_80, %c0_81] : memref<1x16x8xf32, #tpu.memory_space<vmem>>, vector<1x16x8xf32>
    %128 = vector.shape_cast %127 : vector<1x16x8xf32> to vector<16x8xf32>
    %129 = vector.shape_cast %126 : vector<16x8xf32> to vector<1x16x8xf32>
    tpu.vector_store %arg14[%c0_79, %c0_80, %c0_81], %129 {strides = array<i32>} : memref<1x16x8xf32, #tpu.memory_space<vmem>>, vector<1x16x8xf32>,
    return
  }
  func.func @transform_0(%arg0: i32, %arg1: i32) -> (i32, i32, i32) {
    %c0_i32 = arith.constant 0 : i32
    %c0_i32_0 = arith.constant 0 : i32
    return %arg0, %arg1, %c0_i32 : i32, i32, i32
  }
  func.func @transform_1(%arg0: i32, %arg1: i32) -> (i32, i32, i32) {
    %c0_i32 = arith.constant 0 : i32
    %c0_i32_0 = arith.constant 0 : i32
    %c0_i32_1 = arith.constant 0 : i32
    return %arg0, %c0_i32, %c0_i32_0 : i32, i32, i32
  }
  func.func @transform_2(%arg0: i32, %arg1: i32) -> (i32, i32, i32) {
    %c0_i32 = arith.constant 0 : i32
    %c0_i32_0 = arith.constant 0 : i32
    %c0_i32_1 = arith.constant 0 : i32
    return %arg0, %c0_i32, %c0_i32_0 : i32, i32, i32
  }
  func.func @transform_3(%arg0: i32, %arg1: i32) -> (i32, i32) {
    %c0_i32 = arith.constant 0 : i32
    %c0_i32_0 = arith.constant 0 : i32
    %c0_i32_1 = arith.constant 0 : i32
    return %c0_i32, %c0_i32_0 : i32, i32
  }
  func.func @transform_4(%arg0: i32, %arg1: i32) -> (i32, i32) {
    %c0_i32 = arith.constant 0 : i32
    %c0_i32_0 = arith.constant 0 : i32
    %c0_i32_1 = arith.constant 0 : i32
    return %c0_i32, %c0_i32_0 : i32, i32
  }
  func.func @transform_5(%arg0: i32, %arg1: i32) -> (i32, i32) {
    %c0_i32 = arith.constant 0 : i32
    %c0_i32_0 = arith.constant 0 : i32
    %c0_i32_1 = arith.constant 0 : i32
    return %c0_i32, %c0_i32_0 : i32, i32
  }
  func.func @transform_6(%arg0: i32, %arg1: i32) -> (i32, i32) {
    %c0_i32 = arith.constant 0 : i32
    %c0_i32_0 = arith.constant 0 : i32
    %c0_i32_1 = arith.constant 0 : i32
    return %c0_i32, %c0_i32_0 : i32, i32
  }
  func.func @transform_7(%arg0: i32, %arg1: i32) -> (i32, i32) {
    %c0_i32 = arith.constant 0 : i32
    %c0_i32_0 = arith.constant 0 : i32
    %c0_i32_1 = arith.constant 0 : i32
    return %c0_i32, %c0_i32_0 : i32, i32
  }
  func.func @transform_8(%arg0: i32, %arg1: i32) -> (i32, i32) {
    %c0_i32 = arith.constant 0 : i32
    %c0_i32_0 = arith.constant 0 : i32
    %c0_i32_1 = arith.constant 0 : i32
    return %c0_i32, %c0_i32_0 : i32, i32
  }
  func.func @transform_9(%arg0: i32, %arg1: i32) -> (i32, i32) {
    %c0_i32 = arith.constant 0 : i32
    %c0_i32_0 = arith.constant 0 : i32
    %c0_i32_1 = arith.constant 0 : i32
    return %c0_i32, %c0_i32_0 : i32, i32
  }
  func.func @transform_10(%arg0: i32, %arg1: i32) -> (i32, i32) {
    %c0_i32 = arith.constant 0 : i32
    %c0_i32_0 = arith.constant 0 : i32
    %c0_i32_1 = arith.constant 0 : i32
    return %c0_i32, %c0_i32_0 : i32, i32
  }
  func.func @transform_11(%arg0: i32, %arg1: i32) -> (i32, i32, i32) {
    %c0_i32 = arith.constant 0 : i32
    %c0_i32_0 = arith.constant 0 : i32
    return %arg0, %arg1, %c0_i32 : i32, i32, i32
  }
  func.func @transform_12(%arg0: i32, %arg1: i32) -> (i32, i32, i32) {
    %c0_i32 = arith.constant 0 : i32
    %c0_i32_0 = arith.constant 0 : i32
    return %arg0, %arg1, %c0_i32 : i32, i32, i32
  }
}

</mosaic_0001>

<llo_original>
// kernel: tpu_custom_call.1
$region0: #{tpu_custom_call.1}
  #allocation0 [shape = 'u32[]', space=smem, size = 0x4, offset = 0x4, fixed_abs, tag = 'smem constant byte address 0x4 - core index']
  #allocation1 [shape = 'u32[144,128]{1,0:T(1,128)}', space=vmem, size = 0x12000, scoped, tag = 'internal scratch']
  #allocation2 [shape = 'f32[16,64]{1,0:T(8,128)}', space=vmem, size = 0x2000, scoped, tag = 'scratch operand']
  #allocation3 [shape = 'f32[16,8]{1,0:T(8,128)}', space=vmem, size = 0x2000, scoped, tag = 'scratch operand']
  %s0 = inlined_call_operand.hbm [shape: f32[2,16,64], index: 0, kind: input, shape index: {}]
  %s1 = inlined_call_operand.hbm [shape: f32[2,8,64], index: 1, kind: input, shape index: {}]
  %s2 = inlined_call_operand.hbm [shape: f32[2,8,64], index: 2, kind: input, shape index: {}]
  %s3 = inlined_call_operand.hbm [shape: f32[64,64], index: 3, kind: input, shape index: {}]
  %s4 = inlined_call_operand.hbm [shape: f32[64,64], index: 4, kind: input, shape index: {}]
  %s5 = inlined_call_operand.hbm [shape: f32[64,64], index: 5, kind: input, shape index: {}]
  %s6 = inlined_call_operand.vmem [shape: f32[1,64], index: 6, kind: input, shape index: {}]
  %s7 = inlined_call_operand.vmem [shape: f32[1,64], index: 7, kind: input, shape index: {}]
  %s8 = inlined_call_operand.vmem [shape: f32[1,64], index: 8, kind: input, shape index: {}]
  %s9 = inlined_call_operand.hbm [shape: f32[64,64], index: 9, kind: input, shape index: {}]
  %s10 = inlined_call_operand.vmem [shape: f32[1,64], index: 10, kind: input, shape index: {}]
  %s11 = inlined_call_operand.hbm [shape: f32[2,16,64], index: 11, kind: output, shape index: {0}]
  %s12 = inlined_call_operand.vmem [shape: f32[2,16,8], index: 12, kind: output, shape index: {1}]
  %13 = xla_tuple %s11, %s12
  %s14 = sld [smem:[#allocation0]]
  $region113: #{tpu_custom_call.1} parent=0
    _
  %s16 = ssub.s32 1, %s14
  %s17 = scalar_select 0, %s16, %s14
  $region1: #{tpu_custom_call.1} parent=0
    #allocation4 [shape = 'u8[16384]{0}', space=vmem, size = 0x4000, scoped, tag = 'input window, operand 0']
    #allocation5 [shape = 's32[2]{0}', space=sflag, size = 0x8, scoped, tag = 'scoped memory for tpu_custom_call.1']
    #allocation6 [shape = 's32[2]{0}', space=sflag, size = 0x8, scoped, tag = 'scoped memory for tpu_custom_call.1']
    #allocation7 [shape = 'u8[8192]{0}', space=vmem, size = 0x2000, scoped, tag = 'input window, operand 1']
    #allocation8 [shape = 's32[2]{0}', space=sflag, size = 0x8, scoped, tag = 'scoped memory for tpu_custom_call.1']
    #allocation9 [shape = 'u8[8192]{0}', space=vmem, size = 0x2000, scoped, tag = 'input window, operand 2']
    #allocation10 [shape = 'u8[32768]{0}', space=vmem, size = 0x8000, scoped, tag = 'input window, operand 3, single buffered']
    #allocation11 [shape = 's32[1]{0}', space=sflag, size = 0x4, scoped, tag = 'scoped memory for tpu_custom_call.1']
    #allocation12 [shape = 'u8[32768]{0}', space=vmem, size = 0x8000, scoped, tag = 'input window, operand 4, single buffered']
    #allocation13 [shape = 'u8[32768]{0}', space=vmem, size = 0x8000, scoped, tag = 'input window, operand 5, single buffered']
    #allocation14 [shape = 's32[1]{0}', space=sflag, size = 0x4, scoped, tag = 'scoped memory for tpu_custom_call.1']
    #allocation15 [shape = 'u8[32768]{0}', space=vmem, size = 0x8000, scoped, tag = 'input window, operand 9, single buffered']
    #allocation16 [shape = 'u8[16384]{0}', space=vmem, size = 0x4000, scoped, tag = 'output window, operand 0']
    %18 = vsyncpa [#allocation5], 0
    %s19 = scalar_lea.sflag [#allocation5], 1
    %20 = vsyncpa %s19, 0
    %21 = vsyncpa [#allocation8], 0
    %s22 = scalar_lea.sflag [#allocation8], 1
    %23 = vsyncpa %s22, 0
    %24 = vsyncpa [#allocation11], 0
    %25 = vsyncpa [#allocation14], 0
    %26 = vsyncpa [#allocation6], 0
    %s27 = scalar_lea.sflag [#allocation6], 1
    %28 = vsyncpa %s27, 0
    loop: start=0, step=1, limit=4
    $region2: #{tpu_custom_call.1} parent=1 // loop_pre_header
      _
    $region3: #{tpu_custom_call.1} parent=1 // loop_header
      %s30 = sphi 0, %s34
      %p31 = scmp.ge.s32.totalorder %s30, 4
      %s37 = sphi 0, %s49
      %s38 = sphi 0, %s45
      %s39 = sphi 0, %s37
      %s40 = sphi 0, %s38
      %s41 = sphi 0, %s39
      %s42 = sphi 0, %s40
      %s54 = sphi 0, %s56
      %s57 = sphi 0, %s54
      %s58 = sphi 0, %s57
      %s74 = sphi 0, %s58
      %s80 = sphi 0, %s82
      %s83 = sphi 0, %s80
      %s84 = sphi 0, %s83
      %s100 = sphi 0, %s84
      %s106 = sphi 0, %s108
      %s109 = sphi 0, %s106
      %s110 = sphi 0, %s109
      %s126 = sphi 0, %s110
      %s130 = sphi 0, %s130
      %s132 = sphi 0, %s130
      %s133 = sphi 0, %s132
      %s147 = sphi 0, %s133
      %s151 = sphi 0, %s151
      %s153 = sphi 0, %s151
      %s154 = sphi 0, %s153
      %s168 = sphi 0, %s154
      %s172 = sphi 0, %s172
      %s174 = sphi 0, %s172
      %s175 = sphi 0, %s174
      %s189 = sphi 0, %s175
      %s193 = sphi 0, %s193
      %s195 = sphi 0, %s193
      %s196 = sphi 0, %s195
      %s210 = sphi 0, %s196
      %s214 = sphi 0, %s214
      %s216 = sphi 0, %s214
      %s217 = sphi 0, %s216
      %s231 = sphi 0, %s217
      %s235 = sphi 0, %s235
      %s237 = sphi 0, %s235
      %s238 = sphi 0, %s237
      %s252 = sphi 0, %s238
      %s256 = sphi 0, %s256
      %s258 = sphi 0, %s256
      %s259 = sphi 0, %s258
      %s273 = sphi 0, %s259
      %s277 = sphi 0, %s277
      %s279 = sphi 0, %s277
      %s280 = sphi 0, %s279
      %s294 = sphi 0, %s280
      %s302 = sphi 0, %s304
      %s305 = sphi 0, %s302
      %s306 = sphi 0, %s305
      %s322 = sphi 0, %s306
      %s330 = sphi 0, %s332
      %s333 = sphi 0, %s330
      %s334 = sphi 0, %s333
      %s350 = sphi 0, %s334
    $region4: #{tpu_custom_call.1} parent=1 // loop_header_branch
      %33 = sbr.rel (%p31) target = $region8
    $region5: #{tpu_custom_call.1} parent=1 // loop_body
      %s35 = ssub.s32 %s30, 1
      %s36 = ssub.s32 %s30, 2
      %s43 = sadd.s32 1, %s38
      %p44 = scmp.ge.s32.totalorder %s43, 1
      %s45 = scalar_select %p44, 0, %s43
      %s46 = sadd.s32 1, %s37
      %s47 = scalar_select %p44, %s46, %s37
      %p48 = scmp.ge.s32.totalorder %s47, 2
      %s49 = scalar_select %p48, 0, %s47
      %s50 = ssub.s32 %s37, %s49
      %s51 = ssub.s32 %s38, %s45
      %s52 = sor.u32 %s50, %s51
      %p53 = scmp.eq.s32.totalorder %s52, 0
      %s55 = sadd.s32 %s54, 1
      %s56 = scalar_select %p53, %s54, %s55
      %p59 = pneg %p53
      %p60 = scmp.eq.s32.totalorder %s30, 1
      %p61 = por %p59, %p60
      %p62 = scmp.ne.s32.totalorder %s54, %s57
      %p63 = scmp.eq.s32.totalorder %s30, 0
      %p64 = por %p62, %p63
      %p65 = scmp.ne.s32.totalorder %s54, %s57
      %p66 = scmp.eq.s32.totalorder %s35, 1
      %p67 = por %p65, %p66
      %p68 = scmp.ne.s32.totalorder %s57, %s58
      %p69 = scmp.eq.s32.totalorder %s35, 0
      %p70 = por %p68, %p69
      %p71 = scmp.ne.s32.totalorder %s57, %s58
      %p72 = scmp.eq.s32.totalorder %s36, 1
      %p73 = por %p71, %p72
      %p75 = scmp.ne.s32.totalorder %s58, %s74
      %p76 = scmp.eq.s32.totalorder %s36, 0
      %p77 = por %p75, %p76
      %s78 = ssub.s32 %s37, %s49
      %p79 = scmp.eq.s32.totalorder %s78, 0
      %s81 = sadd.s32 %s80, 1
      %s82 = scalar_select %p79, %s80, %s81
      %p85 = pneg %p79
      %p86 = scmp.eq.s32.totalorder %s30, 1
      %p87 = por %p85, %p86
      %p88 = scmp.ne.s32.totalorder %s80, %s83
      %p89 = scmp.eq.s32.totalorder %s30, 0
      %p90 = por %p88, %p89
      %p91 = scmp.ne.s32.totalorder %s80, %s83
      %p92 = scmp.eq.s32.totalorder %s35, 1
      %p93 = por %p91, %p92
      %p94 = scmp.ne.s32.totalorder %s83, %s84
      %p95 = scmp.eq.s32.totalorder %s35, 0
      %p96 = por %p94, %p95
      %p97 = scmp.ne.s32.totalorder %s83, %s84
      %p98 = scmp.eq.s32.totalorder %s36, 1
      %p99 = por %p97, %p98
      %p101 = scmp.ne.s32.totalorder %s84, %s100
      %p102 = scmp.eq.s32.totalorder %s36, 0
      %p103 = por %p101, %p102
      %s104 = ssub.s32 %s37, %s49
      %p105 = scmp.eq.s32.totalorder %s104, 0
      %s107 = sadd.s32 %s106, 1
      %s108 = scalar_select %p105, %s106, %s107
      %p111 = pneg %p105
      %p112 = scmp.eq.s32.totalorder %s30, 1
      %p113 = por %p111, %p112
      %p114 = scmp.ne.s32.totalorder %s106, %s109
      %p115 = scmp.eq.s32.totalorder %s30, 0
      %p116 = por %p114, %p115
      %p117 = scmp.ne.s32.totalorder %s106, %s109
      %p118 = scmp.eq.s32.totalorder %s35, 1
      %p119 = por %p117, %p118
      %p120 = scmp.ne.s32.totalorder %s109, %s110
      %p121 = scmp.eq.s32.totalorder %s35, 0
      %p122 = por %p120, %p121
      %p123 = scmp.ne.s32.totalorder %s109, %s110
      %p124 = scmp.eq.s32.totalorder %s36, 1
      %p125 = por %p123, %p124
      %p127 = scmp.ne.s32.totalorder %s110, %s126
      %p128 = scmp.eq.s32.totalorder %s36, 0
      %p129 = por %p127, %p128
      %s131 = sadd.s32 %s130, 1
      %p134 = scmp.eq.s32.totalorder %s30, 1
      %p135 = scmp.ne.s32.totalorder %s130, %s132
      %p136 = scmp.eq.s32.totalorder %s30, 0
      %p137 = por %p135, %p136
      %p138 = scmp.ne.s32.totalorder %s130, %s132
      %p139 = scmp.eq.s32.totalorder %s35, 1
      %p140 = por %p138, %p139
      %p141 = scmp.ne.s32.totalorder %s132, %s133
      %p142 = scmp.eq.s32.totalorder %s35, 0
      %p143 = por %p141, %p142
      %p144 = scmp.ne.s32.totalorder %s132, %s133
      %p145 = scmp.eq.s32.totalorder %s36, 1
      %p146 = por %p144, %p145
      %p148 = scmp.ne.s32.totalorder %s133, %s147
      %p149 = scmp.eq.s32.totalorder %s36, 0
      %p150 = por %p148, %p149
      %s152 = sadd.s32 %s151, 1
      %p155 = scmp.eq.s32.totalorder %s30, 1
      %p156 = scmp.ne.s32.totalorder %s151, %s153
      %p157 = scmp.eq.s32.totalorder %s30, 0
      %p158 = por %p156, %p157
      %p159 = scmp.ne.s32.totalorder %s151, %s153
      %p160 = scmp.eq.s32.totalorder %s35, 1
      %p161 = por %p159, %p160
      %p162 = scmp.ne.s32.totalorder %s153, %s154
      %p163 = scmp.eq.s32.totalorder %s35, 0
      %p164 = por %p162, %p163
      %p165 = scmp.ne.s32.totalorder %s153, %s154
      %p166 = scmp.eq.s32.totalorder %s36, 1
      %p167 = por %p165, %p166
      %p169 = scmp.ne.s32.totalorder %s154, %s168
      %p170 = scmp.eq.s32.totalorder %s36, 0
      %p171 = por %p169, %p170
      %s173 = sadd.s32 %s172, 1
      %p176 = scmp.eq.s32.totalorder %s30, 1
      %p177 = scmp.ne.s32.totalorder %s172, %s174
      %p178 = scmp.eq.s32.totalorder %s30, 0
      %p179 = por %p177, %p178
      %p180 = scmp.ne.s32.totalorder %s172, %s174
      %p181 = scmp.eq.s32.totalorder %s35, 1
      %p182 = por %p180, %p181
      %p183 = scmp.ne.s32.totalorder %s174, %s175
      %p184 = scmp.eq.s32.totalorder %s35, 0
      %p185 = por %p183, %p184
      %p186 = scmp.ne.s32.totalorder %s174, %s175
      %p187 = scmp.eq.s32.totalorder %s36, 1
      %p188 = por %p186, %p187
      %p190 = scmp.ne.s32.totalorder %s175, %s189
      %p191 = scmp.eq.s32.totalorder %s36, 0
      %p192 = por %p190, %p191
      %s194 = sadd.s32 %s193, 1
      %p197 = scmp.eq.s32.totalorder %s30, 1
      %p198 = scmp.ne.s32.totalorder %s193, %s195
      %p199 = scmp.eq.s32.totalorder %s30, 0
      %p200 = por %p198, %p199
      %p201 = scmp.ne.s32.totalorder %s193, %s195
      %p202 = scmp.eq.s32.totalorder %s35, 1
      %p203 = por %p201, %p202
      %p204 = scmp.ne.s32.totalorder %s195, %s196
      %p205 = scmp.eq.s32.totalorder %s35, 0
      %p206 = por %p204, %p205
      %p207 = scmp.ne.s32.totalorder %s195, %s196
      %p208 = scmp.eq.s32.totalorder %s36, 1
      %p209 = por %p207, %p208
      %p211 = scmp.ne.s32.totalorder %s196, %s210
      %p212 = scmp.eq.s32.totalorder %s36, 0
      %p213 = por %p211, %p212
      %s215 = sadd.s32 %s214, 1
      %p218 = scmp.eq.s32.totalorder %s30, 1
      %p219 = scmp.ne.s32.totalorder %s214, %s216
      %p220 = scmp.eq.s32.totalorder %s30, 0
      %p221 = por %p219, %p220
      %p222 = scmp.ne.s32.totalorder %s214, %s216
      %p223 = scmp.eq.s32.totalorder %s35, 1
      %p224 = por %p222, %p223
      %p225 = scmp.ne.s32.totalorder %s216, %s217
      %p226 = scmp.eq.s32.totalorder %s35, 0
      %p227 = por %p225, %p226
      %p228 = scmp.ne.s32.totalorder %s216, %s217
      %p229 = scmp.eq.s32.totalorder %s36, 1
      %p230 = por %p228, %p229
      %p232 = scmp.ne.s32.totalorder %s217, %s231
      %p233 = scmp.eq.s32.totalorder %s36, 0
      %p234 = por %p232, %p233
      %s236 = sadd.s32 %s235, 1
      %p239 = scmp.eq.s32.totalorder %s30, 1
      %p240 = scmp.ne.s32.totalorder %s235, %s237
      %p241 = scmp.eq.s32.totalorder %s30, 0
      %p242 = por %p240, %p241
      %p243 = scmp.ne.s32.totalorder %s235, %s237
      %p244 = scmp.eq.s32.totalorder %s35, 1
      %p245 = por %p243, %p244
      %p246 = scmp.ne.s32.totalorder %s237, %s238
      %p247 = scmp.eq.s32.totalorder %s35, 0
      %p248 = por %p246, %p247
      %p249 = scmp.ne.s32.totalorder %s237, %s238
      %p250 = scmp.eq.s32.totalorder %s36, 1
      %p251 = por %p249, %p250
      %p253 = scmp.ne.s32.totalorder %s238, %s252
      %p254 = scmp.eq.s32.totalorder %s36, 0
      %p255 = por %p253, %p254
      %s257 = sadd.s32 %s256, 1
      %p260 = scmp.eq.s32.totalorder %s30, 1
      %p261 = scmp.ne.s32.totalorder %s256, %s258
      %p262 = scmp.eq.s32.totalorder %s30, 0
      %p263 = por %p261, %p262
      %p264 = scmp.ne.s32.totalorder %s256, %s258
      %p265 = scmp.eq.s32.totalorder %s35, 1
      %p266 = por %p264, %p265
      %p267 = scmp.ne.s32.totalorder %s258, %s259
      %p268 = scmp.eq.s32.totalorder %s35, 0
      %p269 = por %p267, %p268
      %p270 = scmp.ne.s32.totalorder %s258, %s259
      %p271 = scmp.eq.s32.totalorder %s36, 1
      %p272 = por %p270, %p271
      %p274 = scmp.ne.s32.totalorder %s259, %s273
      %p275 = scmp.eq.s32.totalorder %s36, 0
      %p276 = por %p274, %p275
      %s278 = sadd.s32 %s277, 1
      %p281 = scmp.eq.s32.totalorder %s30, 1
      %p282 = scmp.ne.s32.totalorder %s277, %s279
      %p283 = scmp.eq.s32.totalorder %s30, 0
      %p284 = por %p282, %p283
      %p285 = scmp.ne.s32.totalorder %s277, %s279
      %p286 = scmp.eq.s32.totalorder %s35, 1
      %p287 = por %p285, %p286
      %p288 = scmp.ne.s32.totalorder %s279, %s280
      %p289 = scmp.eq.s32.totalorder %s35, 0
      %p290 = por %p288, %p289
      %p291 = scmp.ne.s32.totalorder %s279, %s280
      %p292 = scmp.eq.s32.totalorder %s36, 1
      %p293 = por %p291, %p292
      %p295 = scmp.ne.s32.totalorder %s280, %s294
      %p296 = scmp.eq.s32.totalorder %s36, 0
      %p297 = por %p295, %p296
      %s298 = ssub.s32 %s37, %s49
      %s299 = ssub.s32 %s38, %s45
      %s300 = sor.u32 %s298, %s299
      %p301 = scmp.eq.s32.totalorder %s300, 0
      %s303 = sadd.s32 %s302, 1
      %s304 = scalar_select %p301, %s302, %s303
      %p307 = pneg %p301
      %p308 = scmp.eq.s32.totalorder %s30, 1
      %p309 = por %p307, %p308
      %p310 = scmp.ne.s32.totalorder %s302, %s305
      %p311 = scmp.eq.s32.totalorder %s30, 0
      %p312 = por %p310, %p311
      %p313 = scmp.ne.s32.totalorder %s302, %s305
      %p314 = scmp.eq.s32.totalorder %s35, 1
      %p315 = por %p313, %p314
      %p316 = scmp.ne.s32.totalorder %s305, %s306
      %p317 = scmp.eq.s32.totalorder %s35, 0
      %p318 = por %p316, %p317
      %p319 = scmp.ne.s32.totalorder %s305, %s306
      %p320 = scmp.eq.s32.totalorder %s36, 1
      %p321 = por %p319, %p320
      %p323 = scmp.ne.s32.totalorder %s306, %s322
      %p324 = scmp.eq.s32.totalorder %s36, 0
      %p325 = por %p323, %p324
      %s326 = ssub.s32 %s37, %s49
      %s327 = ssub.s32 %s38, %s45
      %s328 = sor.u32 %s326, %s327
      %p329 = scmp.eq.s32.totalorder %s328, 0
      %s331 = sadd.s32 %s330, 1
      %s332 = scalar_select %p329, %s330, %s331
      %p335 = pneg %p329
      %p336 = scmp.eq.s32.totalorder %s30, 1
      %p337 = por %p335, %p336
      %p338 = scmp.ne.s32.totalorder %s330, %s333
      %p339 = scmp.eq.s32.totalorder %s30, 0
      %p340 = por %p338, %p339
      %p341 = scmp.ne.s32.totalorder %s330, %s333
      %p342 = scmp.eq.s32.totalorder %s35, 1
      %p343 = por %p341, %p342
      %p344 = scmp.ne.s32.totalorder %s333, %s334
      %p345 = scmp.eq.s32.totalorder %s35, 0
      %p346 = por %p344, %p345
      %p347 = scmp.ne.s32.totalorder %s333, %s334
      %p348 = scmp.eq.s32.totalorder %s36, 1
      %p349 = por %p347, %p348
      %p351 = scmp.ne.s32.totalorder %s334, %s350
      %p352 = scmp.eq.s32.totalorder %s36, 0
      %p353 = por %p351, %p352
      %p354 = scmp.le.s32.totalorder 1, %s30
      %p355 = scmp.lt.s32.totalorder %s30, 3
      %p356 = pnand %p354, %p355
      %p357 = pneg %p356
      // Predicated region
      $region9: #{tpu_custom_call.1} parent=5 // pred_check
        _
      $region10: #{tpu_custom_call.1} parent=5 // pred_check_branch
        %359 = sbr.rel (%p356) target = $region12
      $region11: #{tpu_custom_call.1} parent=5 // pred_region
        %s360 = ssub.s32 %s30, 1
        // Predicated region
        $region13: #{tpu_custom_call.1} parent=11 // pred_check
          %p361 = pneg %p143
        $region14: #{tpu_custom_call.1} parent=11 // pred_check_branch
          %363 = sbr.rel (%p361) target = $region16
        $region15: #{tpu_custom_call.1} parent=11 // pred_region
          %s365 = ssub.s32 1024, 1024
          %366 = vsyncadd [#allocation11], %s365
          %s367 = sshll.u32 [#allocation10], 4
          %s368 = int_to_ptr.vmem [resolvable:$true] %s367
          %373 = dma.hbm_to_vmem [thread:$0]  %s3, 1024, %s368, [#allocation11], 128, 128, 8
        $region16: #{tpu_custom_call.1} parent=11 // pred_fallthru
          _
        // Predicated region
        $region17: #{tpu_custom_call.1} parent=11 // pred_check
          %p374 = pneg %p164
        $region18: #{tpu_custom_call.1} parent=11 // pred_check_branch
          %376 = sbr.rel (%p374) target = $region20
        $region19: #{tpu_custom_call.1} parent=11 // pred_region
          %s378 = ssub.s32 1024, 1024
          %379 = vsyncadd [#allocation11], %s378
          %s380 = sshll.u32 [#allocation12], 4
          %s381 = int_to_ptr.vmem [resolvable:$true] %s380
          %386 = dma.hbm_to_vmem [thread:$0]  %s4, 1024, %s381, [#allocation11], 128, 128, 8
        $region20: #{tpu_custom_call.1} parent=11 // pred_fallthru
          _
        // Predicated region
        $region21: #{tpu_custom_call.1} parent=11 // pred_check
          %p387 = pneg %p185
        $region22: #{tpu_custom_call.1} parent=11 // pred_check_branch
          %389 = sbr.rel (%p387) target = $region24
        $region23: #{tpu_custom_call.1} parent=11 // pred_region
          %s391 = ssub.s32 1024, 1024
          %392 = vsyncadd [#allocation14], %s391
          %s393 = sshll.u32 [#allocation13], 4
          %s394 = int_to_ptr.vmem [resolvable:$true] %s393
          %399 = dma.hbm_to_vmem [thread:$0]  %s5, 1024, %s394, [#allocation14], 128, 128, 8
        $region24: #{tpu_custom_call.1} parent=11 // pred_fallthru
          _
        // Predicated region
        $region25: #{tpu_custom_call.1} parent=11 // pred_check
          %p400 = pneg %p206
        $region26: #{tpu_custom_call.1} parent=11 // pred_check_branch
          %402 = sbr.rel (%p400) target = $region28
        $region27: #{tpu_custom_call.1} parent=11 // pred_region
          _
        $region28: #{tpu_custom_call.1} parent=11 // pred_fallthru
          _
        // Predicated region
        $region29: #{tpu_custom_call.1} parent=11 // pred_check
          %p403 = pneg %p227
        $region30: #{tpu_custom_call.1} parent=11 // pred_check_branch
          %405 = sbr.rel (%p403) target = $region32
        $region31: #{tpu_custom_call.1} parent=11 // pred_region
          _
        $region32: #{tpu_custom_call.1} parent=11 // pred_fallthru
          _
        // Predicated region
        $region33: #{tpu_custom_call.1} parent=11 // pred_check
          %p406 = pneg %p248
        $region34: #{tpu_custom_call.1} parent=11 // pred_check_branch
          %408 = sbr.rel (%p406) target = $region36
        $region35: #{tpu_custom_call.1} parent=11 // pred_region
          _
        $region36: #{tpu_custom_call.1} parent=11 // pred_fallthru
          _
        // Predicated region
        $region37: #{tpu_custom_call.1} parent=11 // pred_check
          %p409 = pneg %p269
        $region38: #{tpu_custom_call.1} parent=11 // pred_check_branch
          %411 = sbr.rel (%p409) target = $region40
        $region39: #{tpu_custom_call.1} parent=11 // pred_region
          %s413 = ssub.s32 1024, 1024
          %414 = vsyncadd [#allocation14], %s413
          %s415 = sshll.u32 [#allocation15], 4
          %s416 = int_to_ptr.vmem [resolvable:$true] %s415
          %421 = dma.hbm_to_vmem [thread:$0]  %s9, 1024, %s416, [#allocation14], 128, 128, 8
        $region40: #{tpu_custom_call.1} parent=11 // pred_fallthru
          _
        // Predicated region
        $region41: #{tpu_custom_call.1} parent=11 // pred_check
          %p422 = pneg %p290
        $region42: #{tpu_custom_call.1} parent=11 // pred_check_branch
          %424 = sbr.rel (%p422) target = $region44
        $region43: #{tpu_custom_call.1} parent=11 // pred_region
          _
        $region44: #{tpu_custom_call.1} parent=11 // pred_fallthru
          _
      $region12: #{tpu_custom_call.1} parent=5 // pred_fallthru
        _
      %p425 = scmp.lt.s32.totalorder %s30, 2
      // Predicated region
      $region45: #{tpu_custom_call.1} parent=5 // pred_check
        %p426 = pneg %p425
      $region46: #{tpu_custom_call.1} parent=5 // pred_check_branch
        %428 = sbr.rel (%p426) target = $region48
      $region47: #{tpu_custom_call.1} parent=5 // pred_region
        // Predicated region
        $region49: #{tpu_custom_call.1} parent=47 // pred_check
          %p429 = pneg %p64
        $region50: #{tpu_custom_call.1} parent=47 // pred_check_branch
          %431 = sbr.rel (%p429) target = $region52
        $region51: #{tpu_custom_call.1} parent=47 // pred_region
          %s432 = sand.u32 %s54, 1
          %s433 = scalar_lea.sflag [#allocation5], %s432
          %s434 = sand.u32 %s54, 1
          %s435 = smul.addr %s434, 16
          %s436 = scalar_lea.vmem [#allocation4], %s435
          %s437 = smul.u32 2, %s38
          %s439 = ssub.s32 256, 256
          %440 = vsyncadd %s433, %s439
          %s441 = smul.addr %s37, 2
          %s442 = sadd.s32 %s437, %s441
          %s443 = smul.addr %s442, 128
          %s444 = scalar_lea.hbm %s0, %s443
          %s445 = sshll.u32 %s436, 4
          %s446 = int_to_ptr.vmem [resolvable:$true] %s445
          %451 = dma.hbm_to_vmem [thread:$0]  %s444, 256, %s446, %s433, 128, 128, 8
        $region52: #{tpu_custom_call.1} parent=47 // pred_fallthru
          _
        // Predicated region
        $region53: #{tpu_custom_call.1} parent=47 // pred_check
          %p452 = pneg %p90
        $region54: #{tpu_custom_call.1} parent=47 // pred_check_branch
          %454 = sbr.rel (%p452) target = $region56
        $region55: #{tpu_custom_call.1} parent=47 // pred_region
          %s455 = sand.u32 %s30, 1
          %s456 = scalar_lea.sflag [#allocation8], %s455
          %s457 = sand.u32 %s80, 1
          %s458 = smul.addr %s457, 8
          %s459 = scalar_lea.vmem [#allocation7], %s458
          %s461 = ssub.s32 128, 128
          %462 = vsyncadd %s456, %s461
          %s463 = smul.addr %s37, 128
          %s464 = scalar_lea.hbm %s1, %s463
          %s466 = sshll.u32 %s459, 4
          %s467 = int_to_ptr.vmem [resolvable:$true] %s466
          %469 = dma.hbm_to_vmem [thread:$0]  %s464, 128, %s467, %s456
        $region56: #{tpu_custom_call.1} parent=47 // pred_fallthru
          _
        // Predicated region
        $region57: #{tpu_custom_call.1} parent=47 // pred_check
          %p470 = pneg %p116
        $region58: #{tpu_custom_call.1} parent=47 // pred_check_branch
          %472 = sbr.rel (%p470) target = $region60
        $region59: #{tpu_custom_call.1} parent=47 // pred_region
          %s473 = sand.u32 %s30, 1
          %s474 = scalar_lea.sflag [#allocation8], %s473
          %s475 = sand.u32 %s106, 1
          %s476 = smul.addr %s475, 8
          %s477 = scalar_lea.vmem [#allocation9], %s476
          %s479 = ssub.s32 128, 128
          %480 = vsyncadd %s474, %s479
          %s481 = smul.addr %s37, 128
          %s482 = scalar_lea.hbm %s2, %s481
          %s484 = sshll.u32 %s477, 4
          %s485 = int_to_ptr.vmem [resolvable:$true] %s484
          %487 = dma.hbm_to_vmem [thread:$0]  %s482, 128, %s485, %s474
        $region60: #{tpu_custom_call.1} parent=47 // pred_fallthru
          _
      $region48: #{tpu_custom_call.1} parent=5 // pred_fallthru
        _
      %p488 = scmp.le.s32.totalorder 1, %s30
      %p489 = scmp.lt.s32.totalorder %s30, 3
      %p490 = pnand %p488, %p489
      %p491 = pneg %p490
      // Predicated region
      $region61: #{tpu_custom_call.1} parent=5 // pred_check
        _
      $region62: #{tpu_custom_call.1} parent=5 // pred_check_branch
        %493 = sbr.rel (%p490) target = $region64
      $region63: #{tpu_custom_call.1} parent=5 // pred_region
        %s494 = ssub.s32 %s30, 1
        %s495 = sand.u32 %s57, 1
        %s496 = scalar_lea.sflag [#allocation5], %s495
        %s497 = sand.u32 %s57, 1
        %s498 = smul.addr %s497, 16
        %s499 = scalar_lea.vmem [#allocation4], %s498
        // Predicated region
        $region65: #{tpu_custom_call.1} parent=63 // pred_check
          %p500 = pneg %p70
        $region66: #{tpu_custom_call.1} parent=63 // pred_check_branch
          %502 = sbr.rel (%p500) target = $region68
        $region67: #{tpu_custom_call.1} parent=63 // pred_region
          %503 = dma.done %s496, 256
        $region68: #{tpu_custom_call.1} parent=63 // pred_fallthru
          _
        %s504 = sand.u32 %s35, 1
        %s505 = scalar_lea.sflag [#allocation8], %s504
        %s506 = sand.u32 %s83, 1
        %s507 = smul.addr %s506, 8
        %s508 = scalar_lea.vmem [#allocation7], %s507
        // Predicated region
        $region69: #{tpu_custom_call.1} parent=63 // pred_check
          %p509 = pneg %p96
        $region70: #{tpu_custom_call.1} parent=63 // pred_check_branch
          %511 = sbr.rel (%p509) target = $region72
        $region71: #{tpu_custom_call.1} parent=63 // pred_region
          %512 = dma.done %s505, 128
        $region72: #{tpu_custom_call.1} parent=63 // pred_fallthru
          _
        %s513 = sand.u32 %s35, 1
        %s514 = scalar_lea.sflag [#allocation8], %s513
        %s515 = sand.u32 %s109, 1
        %s516 = smul.addr %s515, 8
        %s517 = scalar_lea.vmem [#allocation9], %s516
        // Predicated region
        $region73: #{tpu_custom_call.1} parent=63 // pred_check
          %p518 = pneg %p122
        $region74: #{tpu_custom_call.1} parent=63 // pred_check_branch
          %520 = sbr.rel (%p518) target = $region76
        $region75: #{tpu_custom_call.1} parent=63 // pred_region
          %521 = dma.done %s514, 128
        $region76: #{tpu_custom_call.1} parent=63 // pred_fallthru
          _
        // Predicated region
        $region77: #{tpu_custom_call.1} parent=63 // pred_check
          %p522 = pneg %p143
        $region78: #{tpu_custom_call.1} parent=63 // pred_check_branch
          %524 = sbr.rel (%p522) target = $region80
        $region79: #{tpu_custom_call.1} parent=63 // pred_region
          %525 = dma.done [#allocation11], 1024
        $region80: #{tpu_custom_call.1} parent=63 // pred_fallthru
          _
        // Predicated region
        $region81: #{tpu_custom_call.1} parent=63 // pred_check
          %p526 = pneg %p164
        $region82: #{tpu_custom_call.1} parent=63 // pred_check_branch
          %528 = sbr.rel (%p526) target = $region84
        $region83: #{tpu_custom_call.1} parent=63 // pred_region
          %529 = dma.done [#allocation11], 1024
        $region84: #{tpu_custom_call.1} parent=63 // pred_fallthru
          _
        // Predicated region
        $region85: #{tpu_custom_call.1} parent=63 // pred_check
          %p530 = pneg %p185
        $region86: #{tpu_custom_call.1} parent=63 // pred_check_branch
          %532 = sbr.rel (%p530) target = $region88
        $region87: #{tpu_custom_call.1} parent=63 // pred_region
          %533 = dma.done [#allocation14], 1024
        $region88: #{tpu_custom_call.1} parent=63 // pred_fallthru
          _
        // Predicated region
        $region89: #{tpu_custom_call.1} parent=63 // pred_check
          %p534 = pneg %p269
        $region90: #{tpu_custom_call.1} parent=63 // pred_check_branch
          %536 = sbr.rel (%p534) target = $region92
        $region91: #{tpu_custom_call.1} parent=63 // pred_region
          %537 = dma.done [#allocation14], 1024
        $region92: #{tpu_custom_call.1} parent=63 // pred_fallthru
          _
        %s538 = sand.u32 %s57, 1
        %s539 = scalar_lea.sflag [#allocation5], %s538
        %s540 = sand.u32 %s57, 1
        %s541 = smul.addr %s540, 16
        %s542 = scalar_lea.vmem [#allocation4], %s541
        %p543 = pneg %p70
        %p544 = pneg %p67
        %s545 = sand.u32 %s35, 1
        %s546 = scalar_lea.sflag [#allocation8], %s545
        %s547 = sand.u32 %s83, 1
        %s548 = smul.addr %s547, 8
        %s549 = scalar_lea.vmem [#allocation7], %s548
        %p550 = pneg %p96
        %p551 = pneg %p93
        %s552 = sand.u32 %s35, 1
        %s553 = scalar_lea.sflag [#allocation8], %s552
        %s554 = sand.u32 %s109, 1
        %s555 = smul.addr %s554, 8
        %s556 = scalar_lea.vmem [#allocation9], %s555
        %p557 = pneg %p122
        %p558 = pneg %p119
        %p559 = pneg %p143
        %p560 = pneg %p140
        %p561 = pneg %p164
        %p562 = pneg %p161
        %p563 = pneg %p185
        %p564 = pneg %p182
        %p565 = pneg %p206
        %p566 = pneg %p203
        %p567 = pneg %p227
        %p568 = pneg %p224
        %p569 = pneg %p248
        %p570 = pneg %p245
        %p571 = pneg %p269
        %p572 = pneg %p266
        %p573 = pneg %p290
        %p574 = pneg %p287
        %p575 = pneg %p318
        %p576 = pneg %p315
        %s577 = sand.u32 %s305, 1
        %s578 = scalar_lea.sflag [#allocation6], %s577
        %s579 = sand.u32 %s305, 1
        %s580 = smul.addr %s579, 16
        %s581 = scalar_lea.vmem [#allocation16], %s580
        %p582 = pneg %p346
        %p583 = pneg %p343
        %s584 = smul.u32 2, %s40
        %p585 = scmp.lt.s32.totalorder %s39, 1
        %s586 = scalar_select %p585, %s39, 1
        %p587 = scmp.lt.s32.totalorder %s584, 1
        %s588 = scalar_select %p587, %s584, 1
        %s589 = smul.addr %s586, 2
        %s590 = sadd.s32 %s588, %s589
        %s591 = smul.addr %s590, 8
        %s592 = scalar_lea.vmem %s12, %s591
        %s593 = smul.u32 2, %s40
        %s594 = smul.u32 2, %s40
        %s595 = smul.u32 2, %s40
        %p596 = scmp.lt.s32.totalorder %s39, 1
        %s597 = scalar_select %p596, %s39, 1
        %p598 = scmp.lt.s32.totalorder %s595, 1
        %s599 = scalar_select %p598, %s595, 1
        %s600 = smul.addr %s597, 2
        %s601 = sadd.s32 %s599, %s600
        %s602 = smul.addr %s601, 8
        %s603 = scalar_lea.vmem %s12, %s602
        %s604 = smul.u32 2, %s40
        %v605 = vld [vmem:[%s499] sm:$0xff]
        %v606 = vld [vmem:[%s499 + $0x8] sm:$0xff]
        %v607 = vld [vmem:[%s508] sm:$0xff]
        %v608 = vld [vmem:[%s517] sm:$0xff]
        %v609 = vld [vmem:[#allocation10] sm:$0xff]
        %v610 = vld [vmem:[#allocation10 + $0x8] sm:$0xff]
        %v611 = vld [vmem:[#allocation10 + $0x10] sm:$0xff]
        %v612 = vld [vmem:[#allocation10 + $0x18] sm:$0xff]
        %v613 = vld [vmem:[#allocation10 + $0x20] sm:$0xff]
        %v614 = vld [vmem:[#allocation10 + $0x28] sm:$0xff]
        %v615 = vld [vmem:[#allocation10 + $0x30] sm:$0xff]
        %v616 = vld [vmem:[#allocation10 + $0x38] sm:$0xff]
        %v617 = vld [vmem:[%s6] sm:$0x1]
        %v619 = vlaneseq
        %v620 = vshrl.u32 %v619, 7
        %v621 = vsub.s32 0, %v620
        %v622 = vrot.slane %v617, %v621
        %vm624 = vcmask 523264
        %v626 = vsel %vm624, %v605, 0
        %v629 = vsel %vm624, %v606, 0
        %631 = vmatprep.subr.mxu0 0.0
        %632 = vmatpush1.msra.mxu0 %v609
        %633 = vmatprep.subr.mxu0 0.0
        %634 = vmatpush1.msra.mxu0 %v610
        %635 = vmatprep.subr.mxu0 0.0
        %636 = vmatpush1.msra.mxu0 %v611
        %637 = vmatprep.subr.mxu0 0.0
        %638 = vmatpush1.msra.mxu0 %v612
        %639 = vmatprep.subr.mxu0 0.0
        %640 = vmatpush1.msra.mxu0 %v613
        %641 = vmatprep.subr.mxu0 0.0
        %642 = vmatpush1.msra.mxu0 %v614
        %643 = vmatprep.subr.mxu0 0.0
        %644 = vmatpush1.msra.mxu0 %v615
        %645 = vmatprep.subr.mxu0 0.0
        %646 = vmatpush1.msra.mxu0 %v616
        %647 = vmatprep.subr.mxu0 0.0
        %648 = vmatpush1.msra.mxu0 0.0
        %649 = vmatprep.subr.mxu0 0.0
        %650 = vmatpush1.msra.mxu0 0.0
        %651 = vmatprep.subr.mxu0 0.0
        %652 = vmatpush1.msra.mxu0 0.0
        %653 = vmatprep.subr.mxu0 0.0
        %654 = vmatpush1.msra.mxu0 0.0
        %655 = vmatprep.subr.mxu0 0.0
        %656 = vmatpush1.msra.mxu0 0.0
        %657 = vmatprep.subr.mxu0 0.0
        %658 = vmatpush1.msra.mxu0 0.0
        %659 = vmatprep.subr.mxu0 0.0
        %660 = vmatpush1.msra.mxu0 0.0
        %661 = vmatprep.subr.mxu0 0.0
        %662 = vmatpush1.msra.mxu0 0.0
        %663 = vmatprep.subr.mxu0 0.0
        %664 = vmatpush1.msra.mxu0 0.0
        %665 = vmatprep.subr.mxu0 0.0
        %666 = vmatpush1.msra.mxu0 0.0
        %667 = vmatprep.subr.mxu0 0.0
        %668 = vmatpush1.msra.mxu0 0.0
        %669 = vmatprep.subr.mxu0 0.0
        %670 = vmatpush1.msra.mxu0 0.0
        %671 = vmatprep.subr.mxu0 0.0
        %672 = vmatpush1.msra.mxu0 0.0
        %673 = vmatprep.subr.mxu0 0.0
        %674 = vmatpush1.msra.mxu0 0.0
        %675 = vmatprep.subr.mxu0 0.0
        %676 = vmatpush1.msra.mxu0 0.0
        %677 = vmatprep.subr.mxu0 0.0
        %678 = vmatpush1.msra.mxu0 0.0
        %679 = vmatprep.subr.mxu0 0.0
        %680 = vmatpush1.msra.mxu0 0.0
        %681 = vmatprep.subr.mxu0 0.0
        %682 = vmatpush1.msra.mxu0 0.0
        %683 = vmatprep.subr.mxu0 0.0
        %684 = vmatpush1.msra.mxu0 0.0
        %685 = vmatprep.subr.mxu0 0.0
        %686 = vmatpush1.msra.mxu0 0.0
        %687 = vmatprep.subr.mxu0 0.0
        %688 = vmatpush1.msra.mxu0 0.0
        %689 = vmatprep.subr.mxu0 0.0
        %690 = vmatpush1.msra.mxu0 0.0
        %691 = vmatprep.subr.mxu0 0.0
        %692 = vmatpush1.msra.mxu0 0.0
        %693 = vmatprep.subr.mxu0 0.0
        %694 = vmatpush1.msra.mxu0 0.0
        %695 = vmatprep.mubr.f32.mxu0 0.0
        %696 = vmatmul.mubr.f32.gmra.mrb[0].mxu0 %v626
        %v697 = vpop.f32.mrb[0].mxu0
        %v698 = vadd.f32 %v622, %v697
        %v699 = vpop.f32.mrb[0].mxu0
        %700 = vmatprep.mubr.f32.mxu0 0.0
        %701 = vmatmul.mubr.f32.gmra.mrb[0].mxu0 %v629
        %v702 = vpop.f32.mrb[0].mxu0
        %v703 = vadd.f32 %v622, %v702
        %v704 = vpop.f32.mrb[0].mxu0
        %705 = vdwg.mxu0
        %v706 = vld [vmem:[#allocation12] sm:$0xff]
        %v707 = vld [vmem:[#allocation12 + $0x8] sm:$0xff]
        %v708 = vld [vmem:[#allocation12 + $0x10] sm:$0xff]
        %v709 = vld [vmem:[#allocation12 + $0x18] sm:$0xff]
        %v710 = vld [vmem:[#allocation12 + $0x20] sm:$0xff]
        %v711 = vld [vmem:[#allocation12 + $0x28] sm:$0xff]
        %v712 = vld [vmem:[#allocation12 + $0x30] sm:$0xff]
        %v713 = vld [vmem:[#allocation12 + $0x38] sm:$0xff]
        %v714 = vld [vmem:[%s7] sm:$0x1]
        %v716 = vlaneseq
        %v717 = vshrl.u32 %v716, 7
        %v718 = vsub.s32 0, %v717
        %v719 = vrot.slane %v714, %v718
        %v722 = vsel %vm624, %v607, 0
        %724 = vmatprep.subr.mxu0 0.0
        %725 = vmatpush1.msra.mxu0 %v706
        %726 = vmatprep.subr.mxu0 0.0
        %727 = vmatpush1.msra.mxu0 %v707
        %728 = vmatprep.subr.mxu0 0.0
        %729 = vmatpush1.msra.mxu0 %v708
        %730 = vmatprep.subr.mxu0 0.0
        %731 = vmatpush1.msra.mxu0 %v709
        %732 = vmatprep.subr.mxu0 0.0
        %733 = vmatpush1.msra.mxu0 %v710
        %734 = vmatprep.subr.mxu0 0.0
        %735 = vmatpush1.msra.mxu0 %v711
        %736 = vmatprep.subr.mxu0 0.0
        %737 = vmatpush1.msra.mxu0 %v712
        %738 = vmatprep.subr.mxu0 0.0
        %739 = vmatpush1.msra.mxu0 %v713
        %740 = vmatprep.subr.mxu0 0.0
        %741 = vmatpush1.msra.mxu0 0.0
        %742 = vmatprep.subr.mxu0 0.0
        %743 = vmatpush1.msra.mxu0 0.0
        %744 = vmatprep.subr.mxu0 0.0
        %745 = vmatpush1.msra.mxu0 0.0
        %746 = vmatprep.subr.mxu0 0.0
        %747 = vmatpush1.msra.mxu0 0.0
        %748 = vmatprep.subr.mxu0 0.0
        %749 = vmatpush1.msra.mxu0 0.0
        %750 = vmatprep.subr.mxu0 0.0
        %751 = vmatpush1.msra.mxu0 0.0
        %752 = vmatprep.subr.mxu0 0.0
        %753 = vmatpush1.msra.mxu0 0.0
        %754 = vmatprep.subr.mxu0 0.0
        %755 = vmatpush1.msra.mxu0 0.0
        %756 = vmatprep.subr.mxu0 0.0
        %757 = vmatpush1.msra.mxu0 0.0
        %758 = vmatprep.subr.mxu0 0.0
        %759 = vmatpush1.msra.mxu0 0.0
        %760 = vmatprep.subr.mxu0 0.0
        %761 = vmatpush1.msra.mxu0 0.0
        %762 = vmatprep.subr.mxu0 0.0
        %763 = vmatpush1.msra.mxu0 0.0
        %764 = vmatprep.subr.mxu0 0.0
        %765 = vmatpush1.msra.mxu0 0.0
        %766 = vmatprep.subr.mxu0 0.0
        %767 = vmatpush1.msra.mxu0 0.0
        %768 = vmatprep.subr.mxu0 0.0
        %769 = vmatpush1.msra.mxu0 0.0
        %770 = vmatprep.subr.mxu0 0.0
        %771 = vmatpush1.msra.mxu0 0.0
        %772 = vmatprep.subr.mxu0 0.0
        %773 = vmatpush1.msra.mxu0 0.0
        %774 = vmatprep.subr.mxu0 0.0
        %775 = vmatpush1.msra.mxu0 0.0
        %776 = vmatprep.subr.mxu0 0.0
        %777 = vmatpush1.msra.mxu0 0.0
        %778 = vmatprep.subr.mxu0 0.0
        %779 = vmatpush1.msra.mxu0 0.0
        %780 = vmatprep.subr.mxu0 0.0
        %781 = vmatpush1.msra.mxu0 0.0
        %782 = vmatprep.subr.mxu0 0.0
        %783 = vmatpush1.msra.mxu0 0.0
        %784 = vmatprep.subr.mxu0 0.0
        %785 = vmatpush1.msra.mxu0 0.0
        %786 = vmatprep.subr.mxu0 0.0
        %787 = vmatpush1.msra.mxu0 0.0
        %788 = vmatprep.mubr.f32.mxu0 0.0
        %789 = vmatmul.mubr.f32.gmra.mrb[0].mxu0 %v722
        %v790 = vpop.f32.mrb[0].mxu0
        %v791 = vadd.f32 %v719, %v790
        %v792 = vpop.f32.mrb[0].mxu0
        %793 = vdwg.mxu0
        %v794 = vld [vmem:[#allocation13] sm:$0xff]
        %v795 = vld [vmem:[#allocation13 + $0x8] sm:$0xff]
        %v796 = vld [vmem:[#allocation13 + $0x10] sm:$0xff]
        %v797 = vld [vmem:[#allocation13 + $0x18] sm:$0xff]
        %v798 = vld [vmem:[#allocation13 + $0x20] sm:$0xff]
        %v799 = vld [vmem:[#allocation13 + $0x28] sm:$0xff]
        %v800 = vld [vmem:[#allocation13 + $0x30] sm:$0xff]
        %v801 = vld [vmem:[#allocation13 + $0x38] sm:$0xff]
        %v802 = vld [vmem:[%s8] sm:$0x1]
        %v804 = vlaneseq
        %v805 = vshrl.u32 %v804, 7
        %v806 = vsub.s32 0, %v805
        %v807 = vrot.slane %v802, %v806
        %v810 = vsel %vm624, %v608, 0
        %812 = vmatprep.subr.mxu0 0.0
        %813 = vmatpush1.msra.mxu0 %v794
        %814 = vmatprep.subr.mxu0 0.0
        %815 = vmatpush1.msra.mxu0 %v795
        %816 = vmatprep.subr.mxu0 0.0
        %817 = vmatpush1.msra.mxu0 %v796
        %818 = vmatprep.subr.mxu0 0.0
        %819 = vmatpush1.msra.mxu0 %v797
        %820 = vmatprep.subr.mxu0 0.0
        %821 = vmatpush1.msra.mxu0 %v798
        %822 = vmatprep.subr.mxu0 0.0
        %823 = vmatpush1.msra.mxu0 %v799
        %824 = vmatprep.subr.mxu0 0.0
        %825 = vmatpush1.msra.mxu0 %v800
        %826 = vmatprep.subr.mxu0 0.0
        %827 = vmatpush1.msra.mxu0 %v801
        %828 = vmatprep.subr.mxu0 0.0
        %829 = vmatpush1.msra.mxu0 0.0
        %830 = vmatprep.subr.mxu0 0.0
        %831 = vmatpush1.msra.mxu0 0.0
        %832 = vmatprep.subr.mxu0 0.0
        %833 = vmatpush1.msra.mxu0 0.0
        %834 = vmatprep.subr.mxu0 0.0
        %835 = vmatpush1.msra.mxu0 0.0
        %836 = vmatprep.subr.mxu0 0.0
        %837 = vmatpush1.msra.mxu0 0.0
        %838 = vmatprep.subr.mxu0 0.0
        %839 = vmatpush1.msra.mxu0 0.0
        %840 = vmatprep.subr.mxu0 0.0
        %841 = vmatpush1.msra.mxu0 0.0
        %842 = vmatprep.subr.mxu0 0.0
        %843 = vmatpush1.msra.mxu0 0.0
        %844 = vmatprep.subr.mxu0 0.0
        %845 = vmatpush1.msra.mxu0 0.0
        %846 = vmatprep.subr.mxu0 0.0
        %847 = vmatpush1.msra.mxu0 0.0
        %848 = vmatprep.subr.mxu0 0.0
        %849 = vmatpush1.msra.mxu0 0.0
        %850 = vmatprep.subr.mxu0 0.0
        %851 = vmatpush1.msra.mxu0 0.0
        %852 = vmatprep.subr.mxu0 0.0
        %853 = vmatpush1.msra.mxu0 0.0
        %854 = vmatprep.subr.mxu0 0.0
        %855 = vmatpush1.msra.mxu0 0.0
        %856 = vmatprep.subr.mxu0 0.0
        %857 = vmatpush1.msra.mxu0 0.0
        %858 = vmatprep.subr.mxu0 0.0
        %859 = vmatpush1.msra.mxu0 0.0
        %860 = vmatprep.subr.mxu0 0.0
        %861 = vmatpush1.msra.mxu0 0.0
        %862 = vmatprep.subr.mxu0 0.0
        %863 = vmatpush1.msra.mxu0 0.0
        %864 = vmatprep.subr.mxu0 0.0
        %865 = vmatpush1.msra.mxu0 0.0
        %866 = vmatprep.subr.mxu0 0.0
        %867 = vmatpush1.msra.mxu0 0.0
        %868 = vmatprep.subr.mxu0 0.0
        %869 = vmatpush1.msra.mxu0 0.0
        %870 = vmatprep.subr.mxu0 0.0
        %871 = vmatpush1.msra.mxu0 0.0
        %872 = vmatprep.subr.mxu0 0.0
        %873 = vmatpush1.msra.mxu0 0.0
        %874 = vmatprep.subr.mxu0 0.0
        %875 = vmatpush1.msra.mxu0 0.0
        %876 = vmatprep.mubr.f32.mxu0 0.0
        %877 = vmatmul.mubr.f32.gmra.mrb[0].mxu0 %v810
        %v878 = vpop.f32.mrb[0].mxu0
        %v879 = vadd.f32 %v807, %v878
        %v880 = vpop.f32.mrb[0].mxu0
        %881 = vdwg.mxu0
        %vm882 = vcmask 64512
        %883 = vst.msk [vmem:[#allocation3] sm:$0xff] %vm882, 0.0
        %884 = vst.msk [vmem:[#allocation3 + $0x8] sm:$0xff] %vm882, 0.0
        %vm885 = vcmask 130048
        %v887 = vsel %vm885, %v698, 0
        %v890 = vsel %vm885, %v703, 0
        %v893 = vsel %vm885, %v791, 0
        %895 = vmatprep.subr.mxu0 0.0
        %896 = vmatpush1.xpose.msra.mxu0 %v893
        %897 = vmatprep.subr.mxu0 0.0
        %898 = vmatpush1.xpose.msra.mxu0 0.0
        %899 = vmatprep.subr.mxu0 0.0
        %900 = vmatpush1.xpose.msra.mxu0 0.0
        %901 = vmatprep.subr.mxu0 0.0
        %902 = vmatpush1.xpose.msra.mxu0 0.0
        %903 = vmatprep.subr.mxu0 0.0
        %904 = vmatpush1.xpose.msra.mxu0 0.0
        %905 = vmatprep.subr.mxu0 0.0
        %906 = vmatpush1.xpose.msra.mxu0 0.0
        %907 = vmatprep.subr.mxu0 0.0
        %908 = vmatpush1.xpose.msra.mxu0 0.0
        %909 = vmatprep.subr.mxu0 0.0
        %910 = vmatpush1.xpose.msra.mxu0 0.0
        %911 = vmatprep.subr.mxu0 0.0
        %912 = vmatpush1.xpose.msra.mxu0 0.0
        %913 = vmatprep.subr.mxu0 0.0
        %914 = vmatpush1.xpose.msra.mxu0 0.0
        %915 = vmatprep.subr.mxu0 0.0
        %916 = vmatpush1.xpose.msra.mxu0 0.0
        %917 = vmatprep.subr.mxu0 0.0
        %918 = vmatpush1.xpose.msra.mxu0 0.0
        %919 = vmatprep.subr.mxu0 0.0
        %920 = vmatpush1.xpose.msra.mxu0 0.0
        %921 = vmatprep.subr.mxu0 0.0
        %922 = vmatpush1.xpose.msra.mxu0 0.0
        %923 = vmatprep.subr.mxu0 0.0
        %924 = vmatpush1.xpose.msra.mxu0 0.0
        %925 = vmatprep.subr.mxu0 0.0
        %926 = vmatpush1.xpose.msra.mxu0 0.0
        %927 = vmatprep.subr.mxu0 0.0
        %928 = vmatpush1.xpose.msra.mxu0 0.0
        %929 = vmatprep.subr.mxu0 0.0
        %930 = vmatpush1.xpose.msra.mxu0 0.0
        %931 = vmatprep.subr.mxu0 0.0
        %932 = vmatpush1.xpose.msra.mxu0 0.0
        %933 = vmatprep.subr.mxu0 0.0
        %934 = vmatpush1.xpose.msra.mxu0 0.0
        %935 = vmatprep.subr.mxu0 0.0
        %936 = vmatpush1.xpose.msra.mxu0 0.0
        %937 = vmatprep.subr.mxu0 0.0
        %938 = vmatpush1.xpose.msra.mxu0 0.0
        %939 = vmatprep.subr.mxu0 0.0
        %940 = vmatpush1.xpose.msra.mxu0 0.0
        %941 = vmatprep.subr.mxu0 0.0
        %942 = vmatpush1.xpose.msra.mxu0 0.0
        %943 = vmatprep.subr.mxu0 0.0
        %944 = vmatpush1.xpose.msra.mxu0 0.0
        %945 = vmatprep.subr.mxu0 0.0
        %946 = vmatpush1.xpose.msra.mxu0 0.0
        %947 = vmatprep.subr.mxu0 0.0
        %948 = vmatpush1.xpose.msra.mxu0 0.0
        %949 = vmatprep.subr.mxu0 0.0
        %950 = vmatpush1.xpose.msra.mxu0 0.0
        %951 = vmatprep.subr.mxu0 0.0
        %952 = vmatpush1.xpose.msra.mxu0 0.0
        %953 = vmatprep.subr.mxu0 0.0
        %954 = vmatpush1.xpose.msra.mxu0 0.0
        %955 = vmatprep.subr.mxu0 0.0
        %956 = vmatpush1.xpose.msra.mxu0 0.0
        %957 = vmatprep.subr.mxu0 0.0
        %958 = vmatpush1.xpose.msra.mxu0 0.0
        %959 = vmatprep.mubr.f32.mxu0 0.0
        %960 = vmatmul.mubr.f32.gmra.mrb[0].mxu0 %v887
        %v961 = vpop.f32.mrb[0].mxu0
        %v962 = vadd.f32 0.0, %v961
        %v963 = vpop.f32.mrb[0].mxu0
        %964 = vmatprep.mubr.f32.mxu0 0.0
        %965 = vmatmul.mubr.f32.gmra.mrb[0].mxu0 %v890
        %v966 = vpop.f32.mrb[0].mxu0
        %v967 = vadd.f32 0.0, %v966
        %v968 = vpop.f32.mrb[0].mxu0
        %969 = vdwg.mxu0
        %v970 = vsel %vm882, %v962, -inf
        %971 = vmax.xlane.f32.xlu0 %v970
        %v972 = vpop.xlane.xlu0 %971
        %v973 = vsel %vm882, %v967, -inf
        %974 = vmax.xlane.f32.xlu0 %v973
        %v975 = vpop.xlane.xlu0 %974
        %v976 = vsub.f32 %v962, %v972
        %v977 = vsub.f32 %v967, %v975
        %v978 = vmul.f32 %v976, 1.442695
        %v979 = vpow.pop %v978
        %v980 = vmul.f32 %v977, 1.442695
        %v981 = vpow.pop %v980
        %v982 = vsel %vm882, %v979, 0.0
        %983 = vadd.xlane.f32.xlu0 %v982
        %v984 = vpop.xlane.xlu0 %983
        %v985 = vsel %vm882, %v981, 0.0
        %986 = vadd.xlane.f32.xlu0 %v985
        %v987 = vpop.xlane.xlu0 %986
        %v988 = vrcp.pop %v984
        %v989 = vrcp.pop %v987
        %v990 = vmul.f32 %v984, %v988
        %v991 = vmul.f32 %v987, %v989
        %v992 = vsub.f32 2.0, %v990
        %v993 = vsub.f32 2.0, %v991
        %v994 = vmul.f32 %v988, %v992
        %v995 = vmul.f32 %v989, %v993
        %v996 = vmul.f32 %v979, %v994
        %v997 = vmul.f32 %v981, %v995
        %v998 = vld [vmem:[#allocation3] sm:$0xff]
        %v999 = vld [vmem:[#allocation3 + $0x8] sm:$0xff]
        %v1000 = vadd.f32 %v998, %v996
        %v1001 = vadd.f32 %v999, %v997
        %1002 = vst.msk [vmem:[#allocation3] sm:$0xff] %vm882, %v1000
        %1003 = vst.msk [vmem:[#allocation3 + $0x8] sm:$0xff] %vm882, %v1001
        %v1005 = vsel %vm882, %v996, 0
        %v1008 = vsel %vm882, %v997, 0
        %1010 = vmatprep.subr.mxu0 0.0
        %1011 = vmatpush1.msra.mxu0 %v879
        %1012 = vmatprep.subr.mxu0 0.0
        %1013 = vmatpush1.msra.mxu0 0.0
        %1014 = vmatprep.subr.mxu0 0.0
        %1015 = vmatpush1.msra.mxu0 0.0
        %1016 = vmatprep.subr.mxu0 0.0
        %1017 = vmatpush1.msra.mxu0 0.0
        %1018 = vmatprep.subr.mxu0 0.0
        %1019 = vmatpush1.msra.mxu0 0.0
        %1020 = vmatprep.subr.mxu0 0.0
        %1021 = vmatpush1.msra.mxu0 0.0
        %1022 = vmatprep.subr.mxu0 0.0
        %1023 = vmatpush1.msra.mxu0 0.0
        %1024 = vmatprep.subr.mxu0 0.0
        %1025 = vmatpush1.msra.mxu0 0.0
        %1026 = vmatprep.subr.mxu0 0.0
        %1027 = vmatpush1.msra.mxu0 0.0
        %1028 = vmatprep.subr.mxu0 0.0
        %1029 = vmatpush1.msra.mxu0 0.0
        %1030 = vmatprep.subr.mxu0 0.0
        %1031 = vmatpush1.msra.mxu0 0.0
        %1032 = vmatprep.subr.mxu0 0.0
        %1033 = vmatpush1.msra.mxu0 0.0
        %1034 = vmatprep.subr.mxu0 0.0
        %1035 = vmatpush1.msra.mxu0 0.0
        %1036 = vmatprep.subr.mxu0 0.0
        %1037 = vmatpush1.msra.mxu0 0.0
        %1038 = vmatprep.subr.mxu0 0.0
        %1039 = vmatpush1.msra.mxu0 0.0
        %1040 = vmatprep.subr.mxu0 0.0
        %1041 = vmatpush1.msra.mxu0 0.0
        %1042 = vmatprep.subr.mxu0 0.0
        %1043 = vmatpush1.msra.mxu0 0.0
        %1044 = vmatprep.subr.mxu0 0.0
        %1045 = vmatpush1.msra.mxu0 0.0
        %1046 = vmatprep.subr.mxu0 0.0
        %1047 = vmatpush1.msra.mxu0 0.0
        %1048 = vmatprep.subr.mxu0 0.0
        %1049 = vmatpush1.msra.mxu0 0.0
        %1050 = vmatprep.subr.mxu0 0.0
        %1051 = vmatpush1.msra.mxu0 0.0
        %1052 = vmatprep.subr.mxu0 0.0
        %1053 = vmatpush1.msra.mxu0 0.0
        %1054 = vmatprep.subr.mxu0 0.0
        %1055 = vmatpush1.msra.mxu0 0.0
        %1056 = vmatprep.subr.mxu0 0.0
        %1057 = vmatpush1.msra.mxu0 0.0
        %1058 = vmatprep.subr.mxu0 0.0
        %1059 = vmatpush1.msra.mxu0 0.0
        %1060 = vmatprep.subr.mxu0 0.0
        %1061 = vmatpush1.msra.mxu0 0.0
        %1062 = vmatprep.subr.mxu0 0.0
        %1063 = vmatpush1.msra.mxu0 0.0
        %1064 = vmatprep.subr.mxu0 0.0
        %1065 = vmatpush1.msra.mxu0 0.0
        %1066 = vmatprep.subr.mxu0 0.0
        %1067 = vmatpush1.msra.mxu0 0.0
        %1068 = vmatprep.subr.mxu0 0.0
        %1069 = vmatpush1.msra.mxu0 0.0
        %1070 = vmatprep.subr.mxu0 0.0
        %1071 = vmatpush1.msra.mxu0 0.0
        %1072 = vmatprep.subr.mxu0 0.0
        %1073 = vmatpush1.msra.mxu0 0.0
        %1074 = vmatprep.mubr.f32.mxu0 0.0
        %1075 = vmatmul.mubr.f32.gmra.mrb[0].mxu0 %v1005
        %v1076 = vpop.f32.mrb[0].mxu0
        %v1077 = vadd.f32 0.0, %v1076
        %v1078 = vpop.f32.mrb[0].mxu0
        %1079 = vmatprep.mubr.f32.mxu0 0.0
        %1080 = vmatmul.mubr.f32.gmra.mrb[0].mxu0 %v1008
        %v1081 = vpop.f32.mrb[0].mxu0
        %v1082 = vadd.f32 0.0, %v1081
        %v1083 = vpop.f32.mrb[0].mxu0
        %1084 = vdwg.mxu0
        %1085 = vst.msk [vmem:[#allocation2] sm:$0xff] %vm885, %v1077
        %1086 = vst.msk [vmem:[#allocation2 + $0x8] sm:$0xff] %vm885, %v1082
        %1087 = vrot.lane.b32.xlu0 %v698, 112
        %v1088 = vpop.permute.xlu0 %1087
        %1089 = vrot.lane.b32.xlu0 %v703, 112
        %v1090 = vpop.permute.xlu0 %1089
        %1091 = vrot.lane.b32.xlu0 %v791, 112
        %v1092 = vpop.permute.xlu0 %1091
        %v1093 = vsel %vm885, %v1088, 0
        %v1095 = vsel %vm885, %v1090, 0
        %v1097 = vsel %vm885, %v1092, 0
        %1099 = vmatprep.subr.mxu0 0.0
        %1100 = vmatpush1.xpose.msra.mxu0 %v1097
        %1101 = vmatprep.subr.mxu0 0.0
        %1102 = vmatpush1.xpose.msra.mxu0 0.0
        %1103 = vmatprep.subr.mxu0 0.0
        %1104 = vmatpush1.xpose.msra.mxu0 0.0
        %1105 = vmatprep.subr.mxu0 0.0
        %1106 = vmatpush1.xpose.msra.mxu0 0.0
        %1107 = vmatprep.subr.mxu0 0.0
        %1108 = vmatpush1.xpose.msra.mxu0 0.0
        %1109 = vmatprep.subr.mxu0 0.0
        %1110 = vmatpush1.xpose.msra.mxu0 0.0
        %1111 = vmatprep.subr.mxu0 0.0
        %1112 = vmatpush1.xpose.msra.mxu0 0.0
        %1113 = vmatprep.subr.mxu0 0.0
        %1114 = vmatpush1.xpose.msra.mxu0 0.0
        %1115 = vmatprep.subr.mxu0 0.0
        %1116 = vmatpush1.xpose.msra.mxu0 0.0
        %1117 = vmatprep.subr.mxu0 0.0
        %1118 = vmatpush1.xpose.msra.mxu0 0.0
        %1119 = vmatprep.subr.mxu0 0.0
        %1120 = vmatpush1.xpose.msra.mxu0 0.0
        %1121 = vmatprep.subr.mxu0 0.0
        %1122 = vmatpush1.xpose.msra.mxu0 0.0
        %1123 = vmatprep.subr.mxu0 0.0
        %1124 = vmatpush1.xpose.msra.mxu0 0.0
        %1125 = vmatprep.subr.mxu0 0.0
        %1126 = vmatpush1.xpose.msra.mxu0 0.0
        %1127 = vmatprep.subr.mxu0 0.0
        %1128 = vmatpush1.xpose.msra.mxu0 0.0
        %1129 = vmatprep.subr.mxu0 0.0
        %1130 = vmatpush1.xpose.msra.mxu0 0.0
        %1131 = vmatprep.subr.mxu0 0.0
        %1132 = vmatpush1.xpose.msra.mxu0 0.0
        %1133 = vmatprep.subr.mxu0 0.0
        %1134 = vmatpush1.xpose.msra.mxu0 0.0
        %1135 = vmatprep.subr.mxu0 0.0
        %1136 = vmatpush1.xpose.msra.mxu0 0.0
        %1137 = vmatprep.subr.mxu0 0.0
        %1138 = vmatpush1.xpose.msra.mxu0 0.0
        %1139 = vmatprep.subr.mxu0 0.0
        %1140 = vmatpush1.xpose.msra.mxu0 0.0
        %1141 = vmatprep.subr.mxu0 0.0
        %1142 = vmatpush1.xpose.msra.mxu0 0.0
        %1143 = vmatprep.subr.mxu0 0.0
        %1144 = vmatpush1.xpose.msra.mxu0 0.0
        %1145 = vmatprep.subr.mxu0 0.0
        %1146 = vmatpush1.xpose.msra.mxu0 0.0
        %1147 = vmatprep.subr.mxu0 0.0
        %1148 = vmatpush1.xpose.msra.mxu0 0.0
        %1149 = vmatprep.subr.mxu0 0.0
        %1150 = vmatpush1.xpose.msra.mxu0 0.0
        %1151 = vmatprep.subr.mxu0 0.0
        %1152 = vmatpush1.xpose.msra.mxu0 0.0
        %1153 = vmatprep.subr.mxu0 0.0
        %1154 = vmatpush1.xpose.msra.mxu0 0.0
        %1155 = vmatprep.subr.mxu0 0.0
        %1156 = vmatpush1.xpose.msra.mxu0 0.0
        %1157 = vmatprep.subr.mxu0 0.0
        %1158 = vmatpush1.xpose.msra.mxu0 0.0
        %1159 = vmatprep.subr.mxu0 0.0
        %1160 = vmatpush1.xpose.msra.mxu0 0.0
        %1161 = vmatprep.subr.mxu0 0.0
        %1162 = vmatpush1.xpose.msra.mxu0 0.0
        %1163 = vmatprep.mubr.f32.mxu0 0.0
        %1164 = vmatmul.mubr.f32.gmra.mrb[0].mxu0 %v1093
        %v1165 = vpop.f32.mrb[0].mxu0
        %v1166 = vadd.f32 0.0, %v1165
        %v1167 = vpop.f32.mrb[0].mxu0
        %1168 = vmatprep.mubr.f32.mxu0 0.0
        %1169 = vmatmul.mubr.f32.gmra.mrb[0].mxu0 %v1095
        %v1170 = vpop.f32.mrb[0].mxu0
        %v1171 = vadd.f32 0.0, %v1170
        %v1172 = vpop.f32.mrb[0].mxu0
        %1173 = vdwg.mxu0
        %v1174 = vsel %vm882, %v1166, -inf
        %1175 = vmax.xlane.f32.xlu0 %v1174
        %v1176 = vpop.xlane.xlu0 %1175
        %v1177 = vsel %vm882, %v1171, -inf
        %1178 = vmax.xlane.f32.xlu0 %v1177
        %v1179 = vpop.xlane.xlu0 %1178
        %v1180 = vsub.f32 %v1166, %v1176
        %v1181 = vsub.f32 %v1171, %v1179
        %v1182 = vmul.f32 %v1180, 1.442695
        %v1183 = vpow.pop %v1182
        %v1184 = vmul.f32 %v1181, 1.442695
        %v1185 = vpow.pop %v1184
        %v1186 = vsel %vm882, %v1183, 0.0
        %1187 = vadd.xlane.f32.xlu0 %v1186
        %v1188 = vpop.xlane.xlu0 %1187
        %v1189 = vsel %vm882, %v1185, 0.0
        %1190 = vadd.xlane.f32.xlu0 %v1189
        %v1191 = vpop.xlane.xlu0 %1190
        %v1192 = vrcp.pop %v1188
        %v1193 = vrcp.pop %v1191
        %v1194 = vmul.f32 %v1188, %v1192
        %v1195 = vmul.f32 %v1191, %v1193
        %v1196 = vsub.f32 2.0, %v1194
        %v1197 = vsub.f32 2.0, %v1195
        %v1198 = vmul.f32 %v1192, %v1196
        %v1199 = vmul.f32 %v1193, %v1197
        %v1200 = vmul.f32 %v1183, %v1198
        %v1201 = vmul.f32 %v1185, %v1199
        %v1202 = vld [vmem:[#allocation3] sm:$0xff]
        %v1203 = vld [vmem:[#allocation3 + $0x8] sm:$0xff]
        %v1204 = vadd.f32 %v1202, %v1200
        %v1205 = vadd.f32 %v1203, %v1201
        %1206 = vst.msk [vmem:[#allocation3] sm:$0xff] %vm882, %v1204
        %1207 = vst.msk [vmem:[#allocation3 + $0x8] sm:$0xff] %vm882, %v1205
        %1209 = vrot.lane.b32.xlu0 %v879, 112
        %v1210 = vpop.permute.xlu0 %1209
        %v1213 = vsel %vm882, %v1200, 0
        %v1216 = vsel %vm882, %v1201, 0
        %1218 = vmatprep.subr.mxu0 0.0
        %1219 = vmatpush1.msra.mxu0 %v1210
        %1220 = vmatprep.subr.mxu0 0.0
        %1221 = vmatpush1.msra.mxu0 0.0
        %1222 = vmatprep.subr.mxu0 0.0
        %1223 = vmatpush1.msra.mxu0 0.0
        %1224 = vmatprep.subr.mxu0 0.0
        %1225 = vmatpush1.msra.mxu0 0.0
        %1226 = vmatprep.subr.mxu0 0.0
        %1227 = vmatpush1.msra.mxu0 0.0
        %1228 = vmatprep.subr.mxu0 0.0
        %1229 = vmatpush1.msra.mxu0 0.0
        %1230 = vmatprep.subr.mxu0 0.0
        %1231 = vmatpush1.msra.mxu0 0.0
        %1232 = vmatprep.subr.mxu0 0.0
        %1233 = vmatpush1.msra.mxu0 0.0
        %1234 = vmatprep.subr.mxu0 0.0
        %1235 = vmatpush1.msra.mxu0 0.0
        %1236 = vmatprep.subr.mxu0 0.0
        %1237 = vmatpush1.msra.mxu0 0.0
        %1238 = vmatprep.subr.mxu0 0.0
        %1239 = vmatpush1.msra.mxu0 0.0
        %1240 = vmatprep.subr.mxu0 0.0
        %1241 = vmatpush1.msra.mxu0 0.0
        %1242 = vmatprep.subr.mxu0 0.0
        %1243 = vmatpush1.msra.mxu0 0.0
        %1244 = vmatprep.subr.mxu0 0.0
        %1245 = vmatpush1.msra.mxu0 0.0
        %1246 = vmatprep.subr.mxu0 0.0
        %1247 = vmatpush1.msra.mxu0 0.0
        %1248 = vmatprep.subr.mxu0 0.0
        %1249 = vmatpush1.msra.mxu0 0.0
        %1250 = vmatprep.subr.mxu0 0.0
        %1251 = vmatpush1.msra.mxu0 0.0
        %1252 = vmatprep.subr.mxu0 0.0
        %1253 = vmatpush1.msra.mxu0 0.0
        %1254 = vmatprep.subr.mxu0 0.0
        %1255 = vmatpush1.msra.mxu0 0.0
        %1256 = vmatprep.subr.mxu0 0.0
        %1257 = vmatpush1.msra.mxu0 0.0
        %1258 = vmatprep.subr.mxu0 0.0
        %1259 = vmatpush1.msra.mxu0 0.0
        %1260 = vmatprep.subr.mxu0 0.0
        %1261 = vmatpush1.msra.mxu0 0.0
        %1262 = vmatprep.subr.mxu0 0.0
        %1263 = vmatpush1.msra.mxu0 0.0
        %1264 = vmatprep.subr.mxu0 0.0
        %1265 = vmatpush1.msra.mxu0 0.0
        %1266 = vmatprep.subr.mxu0 0.0
        %1267 = vmatpush1.msra.mxu0 0.0
        %1268 = vmatprep.subr.mxu0 0.0
        %1269 = vmatpush1.msra.mxu0 0.0
        %1270 = vmatprep.subr.mxu0 0.0
        %1271 = vmatpush1.msra.mxu0 0.0
        %1272 = vmatprep.subr.mxu0 0.0
        %1273 = vmatpush1.msra.mxu0 0.0
        %1274 = vmatprep.subr.mxu0 0.0
        %1275 = vmatpush1.msra.mxu0 0.0
        %1276 = vmatprep.subr.mxu0 0.0
        %1277 = vmatpush1.msra.mxu0 0.0
        %1278 = vmatprep.subr.mxu0 0.0
        %1279 = vmatpush1.msra.mxu0 0.0
        %1280 = vmatprep.subr.mxu0 0.0
        %1281 = vmatpush1.msra.mxu0 0.0
        %1282 = vmatprep.mubr.f32.mxu0 0.0
        %1283 = vmatmul.mubr.f32.gmra.mrb[0].mxu0 %v1213
        %v1284 = vpop.f32.mrb[0].mxu0
        %v1285 = vadd.f32 0.0, %v1284
        %v1286 = vpop.f32.mrb[0].mxu0
        %1287 = vmatprep.mubr.f32.mxu0 0.0
        %1288 = vmatmul.mubr.f32.gmra.mrb[0].mxu0 %v1216
        %v1289 = vpop.f32.mrb[0].mxu0
        %v1290 = vadd.f32 0.0, %v1289
        %v1291 = vpop.f32.mrb[0].mxu0
        %1292 = vdwg.mxu0
        %1295 = vrot.lane.b32.xlu0 %v1285, 16
        %v1296 = vpop.permute.xlu0 %1295
        %1297 = vrot.lane.b32.xlu0 %v1290, 16
        %v1298 = vpop.permute.xlu0 %1297
        %vm1301 = vcmask 261248
        %1302 = vst.msk [vmem:[#allocation2] sm:$0xff] %vm1301, %v1296
        %1303 = vst.msk [vmem:[#allocation2 + $0x8] sm:$0xff] %vm1301, %v1298
        %1304 = vrot.lane.b32.xlu0 %v698, 96
        %v1305 = vpop.permute.xlu0 %1304
        %1306 = vrot.lane.b32.xlu0 %v703, 96
        %v1307 = vpop.permute.xlu0 %1306
        %1308 = vrot.lane.b32.xlu0 %v791, 96
        %v1309 = vpop.permute.xlu0 %1308
        %v1310 = vsel %vm885, %v1305, 0
        %v1312 = vsel %vm885, %v1307, 0
        %v1314 = vsel %vm885, %v1309, 0
        %1316 = vmatprep.subr.mxu0 0.0
        %1317 = vmatpush1.xpose.msra.mxu0 %v1314
        %1318 = vmatprep.subr.mxu0 0.0
        %1319 = vmatpush1.xpose.msra.mxu0 0.0
        %1320 = vmatprep.subr.mxu0 0.0
        %1321 = vmatpush1.xpose.msra.mxu0 0.0
        %1322 = vmatprep.subr.mxu0 0.0
        %1323 = vmatpush1.xpose.msra.mxu0 0.0
        %1324 = vmatprep.subr.mxu0 0.0
        %1325 = vmatpush1.xpose.msra.mxu0 0.0
        %1326 = vmatprep.subr.mxu0 0.0
        %1327 = vmatpush1.xpose.msra.mxu0 0.0
        %1328 = vmatprep.subr.mxu0 0.0
        %1329 = vmatpush1.xpose.msra.mxu0 0.0
        %1330 = vmatprep.subr.mxu0 0.0
        %1331 = vmatpush1.xpose.msra.mxu0 0.0
        %1332 = vmatprep.subr.mxu0 0.0
        %1333 = vmatpush1.xpose.msra.mxu0 0.0
        %1334 = vmatprep.subr.mxu0 0.0
        %1335 = vmatpush1.xpose.msra.mxu0 0.0
        %1336 = vmatprep.subr.mxu0 0.0
        %1337 = vmatpush1.xpose.msra.mxu0 0.0
        %1338 = vmatprep.subr.mxu0 0.0
        %1339 = vmatpush1.xpose.msra.mxu0 0.0
        %1340 = vmatprep.subr.mxu0 0.0
        %1341 = vmatpush1.xpose.msra.mxu0 0.0
        %1342 = vmatprep.subr.mxu0 0.0
        %1343 = vmatpush1.xpose.msra.mxu0 0.0
        %1344 = vmatprep.subr.mxu0 0.0
        %1345 = vmatpush1.xpose.msra.mxu0 0.0
        %1346 = vmatprep.subr.mxu0 0.0
        %1347 = vmatpush1.xpose.msra.mxu0 0.0
        %1348 = vmatprep.subr.mxu0 0.0
        %1349 = vmatpush1.xpose.msra.mxu0 0.0
        %1350 = vmatprep.subr.mxu0 0.0
        %1351 = vmatpush1.xpose.msra.mxu0 0.0
        %1352 = vmatprep.subr.mxu0 0.0
        %1353 = vmatpush1.xpose.msra.mxu0 0.0
        %1354 = vmatprep.subr.mxu0 0.0
        %1355 = vmatpush1.xpose.msra.mxu0 0.0
        %1356 = vmatprep.subr.mxu0 0.0
        %1357 = vmatpush1.xpose.msra.mxu0 0.0
        %1358 = vmatprep.subr.mxu0 0.0
        %1359 = vmatpush1.xpose.msra.mxu0 0.0
        %1360 = vmatprep.subr.mxu0 0.0
        %1361 = vmatpush1.xpose.msra.mxu0 0.0
        %1362 = vmatprep.subr.mxu0 0.0
        %1363 = vmatpush1.xpose.msra.mxu0 0.0
        %1364 = vmatprep.subr.mxu0 0.0
        %1365 = vmatpush1.xpose.msra.mxu0 0.0
        %1366 = vmatprep.subr.mxu0 0.0
        %1367 = vmatpush1.xpose.msra.mxu0 0.0
        %1368 = vmatprep.subr.mxu0 0.0
        %1369 = vmatpush1.xpose.msra.mxu0 0.0
        %1370 = vmatprep.subr.mxu0 0.0
        %1371 = vmatpush1.xpose.msra.mxu0 0.0
        %1372 = vmatprep.subr.mxu0 0.0
        %1373 = vmatpush1.xpose.msra.mxu0 0.0
        %1374 = vmatprep.subr.mxu0 0.0
        %1375 = vmatpush1.xpose.msra.mxu0 0.0
        %1376 = vmatprep.subr.mxu0 0.0
        %1377 = vmatpush1.xpose.msra.mxu0 0.0
        %1378 = vmatprep.subr.mxu0 0.0
        %1379 = vmatpush1.xpose.msra.mxu0 0.0
        %1380 = vmatprep.mubr.f32.mxu0 0.0
        %1381 = vmatmul.mubr.f32.gmra.mrb[0].mxu0 %v1310
        %v1382 = vpop.f32.mrb[0].mxu0
        %v1383 = vadd.f32 0.0, %v1382
        %v1384 = vpop.f32.mrb[0].mxu0
        %1385 = vmatprep.mubr.f32.mxu0 0.0
        %1386 = vmatmul.mubr.f32.gmra.mrb[0].mxu0 %v1312
        %v1387 = vpop.f32.mrb[0].mxu0
        %v1388 = vadd.f32 0.0, %v1387
        %v1389 = vpop.f32.mrb[0].mxu0
        %1390 = vdwg.mxu0
        %v1391 = vsel %vm882, %v1383, -inf
        %1392 = vmax.xlane.f32.xlu0 %v1391
        %v1393 = vpop.xlane.xlu0 %1392
        %v1394 = vsel %vm882, %v1388, -inf
        %1395 = vmax.xlane.f32.xlu0 %v1394
        %v1396 = vpop.xlane.xlu0 %1395
        %v1397 = vsub.f32 %v1383, %v1393
        %v1398 = vsub.f32 %v1388, %v1396
        %v1399 = vmul.f32 %v1397, 1.442695
        %v1400 = vpow.pop %v1399
        %v1401 = vmul.f32 %v1398, 1.442695
        %v1402 = vpow.pop %v1401
        %v1403 = vsel %vm882, %v1400, 0.0
        %1404 = vadd.xlane.f32.xlu0 %v1403
        %v1405 = vpop.xlane.xlu0 %1404
        %v1406 = vsel %vm882, %v1402, 0.0
        %1407 = vadd.xlane.f32.xlu0 %v1406
        %v1408 = vpop.xlane.xlu0 %1407
        %v1409 = vrcp.pop %v1405
        %v1410 = vrcp.pop %v1408
        %v1411 = vmul.f32 %v1405, %v1409
        %v1412 = vmul.f32 %v1408, %v1410
        %v1413 = vsub.f32 2.0, %v1411
        %v1414 = vsub.f32 2.0, %v1412
        %v1415 = vmul.f32 %v1409, %v1413
        %v1416 = vmul.f32 %v1410, %v1414
        %v1417 = vmul.f32 %v1400, %v1415
        %v1418 = vmul.f32 %v1402, %v1416
        %v1419 = vld [vmem:[#allocation3] sm:$0xff]
        %v1420 = vld [vmem:[#allocation3 + $0x8] sm:$0xff]
        %v1421 = vadd.f32 %v1419, %v1417
        %v1422 = vadd.f32 %v1420, %v1418
        %1423 = vst.msk [vmem:[#allocation3] sm:$0xff] %vm882, %v1421
        %1424 = vst.msk [vmem:[#allocation3 + $0x8] sm:$0xff] %vm882, %v1422
        %1425 = vrot.lane.b32.xlu0 %v879, 96
        %v1426 = vpop.permute.xlu0 %1425
        %v1429 = vsel %vm882, %v1417, 0
        %v1432 = vsel %vm882, %v1418, 0
        %1434 = vmatprep.subr.mxu0 0.0
        %1435 = vmatpush1.msra.mxu0 %v1426
        %1436 = vmatprep.subr.mxu0 0.0
        %1437 = vmatpush1.msra.mxu0 0.0
        %1438 = vmatprep.subr.mxu0 0.0
        %1439 = vmatpush1.msra.mxu0 0.0
        %1440 = vmatprep.subr.mxu0 0.0
        %1441 = vmatpush1.msra.mxu0 0.0
        %1442 = vmatprep.subr.mxu0 0.0
        %1443 = vmatpush1.msra.mxu0 0.0
        %1444 = vmatprep.subr.mxu0 0.0
        %1445 = vmatpush1.msra.mxu0 0.0
        %1446 = vmatprep.subr.mxu0 0.0
        %1447 = vmatpush1.msra.mxu0 0.0
        %1448 = vmatprep.subr.mxu0 0.0
        %1449 = vmatpush1.msra.mxu0 0.0
        %1450 = vmatprep.subr.mxu0 0.0
        %1451 = vmatpush1.msra.mxu0 0.0
        %1452 = vmatprep.subr.mxu0 0.0
        %1453 = vmatpush1.msra.mxu0 0.0
        %1454 = vmatprep.subr.mxu0 0.0
        %1455 = vmatpush1.msra.mxu0 0.0
        %1456 = vmatprep.subr.mxu0 0.0
        %1457 = vmatpush1.msra.mxu0 0.0
        %1458 = vmatprep.subr.mxu0 0.0
        %1459 = vmatpush1.msra.mxu0 0.0
        %1460 = vmatprep.subr.mxu0 0.0
        %1461 = vmatpush1.msra.mxu0 0.0
        %1462 = vmatprep.subr.mxu0 0.0
        %1463 = vmatpush1.msra.mxu0 0.0
        %1464 = vmatprep.subr.mxu0 0.0
        %1465 = vmatpush1.msra.mxu0 0.0
        %1466 = vmatprep.subr.mxu0 0.0
        %1467 = vmatpush1.msra.mxu0 0.0
        %1468 = vmatprep.subr.mxu0 0.0
        %1469 = vmatpush1.msra.mxu0 0.0
        %1470 = vmatprep.subr.mxu0 0.0
        %1471 = vmatpush1.msra.mxu0 0.0
        %1472 = vmatprep.subr.mxu0 0.0
        %1473 = vmatpush1.msra.mxu0 0.0
        %1474 = vmatprep.subr.mxu0 0.0
        %1475 = vmatpush1.msra.mxu0 0.0
        %1476 = vmatprep.subr.mxu0 0.0
        %1477 = vmatpush1.msra.mxu0 0.0
        %1478 = vmatprep.subr.mxu0 0.0
        %1479 = vmatpush1.msra.mxu0 0.0
        %1480 = vmatprep.subr.mxu0 0.0
        %1481 = vmatpush1.msra.mxu0 0.0
        %1482 = vmatprep.subr.mxu0 0.0
        %1483 = vmatpush1.msra.mxu0 0.0
        %1484 = vmatprep.subr.mxu0 0.0
        %1485 = vmatpush1.msra.mxu0 0.0
        %1486 = vmatprep.subr.mxu0 0.0
        %1487 = vmatpush1.msra.mxu0 0.0
        %1488 = vmatprep.subr.mxu0 0.0
        %1489 = vmatpush1.msra.mxu0 0.0
        %1490 = vmatprep.subr.mxu0 0.0
        %1491 = vmatpush1.msra.mxu0 0.0
        %1492 = vmatprep.subr.mxu0 0.0
        %1493 = vmatpush1.msra.mxu0 0.0
        %1494 = vmatprep.subr.mxu0 0.0
        %1495 = vmatpush1.msra.mxu0 0.0
        %1496 = vmatprep.subr.mxu0 0.0
        %1497 = vmatpush1.msra.mxu0 0.0
        %1498 = vmatprep.mubr.f32.mxu0 0.0
        %1499 = vmatmul.mubr.f32.gmra.mrb[0].mxu0 %v1429
        %v1500 = vpop.f32.mrb[0].mxu0
        %v1501 = vadd.f32 0.0, %v1500
        %v1502 = vpop.f32.mrb[0].mxu0
        %1503 = vmatprep.mubr.f32.mxu0 0.0
        %1504 = vmatmul.mubr.f32.gmra.mrb[0].mxu0 %v1432
        %v1505 = vpop.f32.mrb[0].mxu0
        %v1506 = vadd.f32 0.0, %v1505
        %v1507 = vpop.f32.mrb[0].mxu0
        %1508 = vdwg.mxu0
        %1511 = vrot.lane.b32.xlu0 %v1501, 32
        %v1512 = vpop.permute.xlu0 %1511
        %1513 = vrot.lane.b32.xlu0 %v1506, 32
        %v1514 = vpop.permute.xlu0 %1513
        %vm1517 = vcmask 392448
        %1518 = vst.msk [vmem:[#allocation2] sm:$0xff] %vm1517, %v1512
        %1519 = vst.msk [vmem:[#allocation2 + $0x8] sm:$0xff] %vm1517, %v1514
        %1520 = vrot.lane.b32.xlu0 %v698, 80
        %v1521 = vpop.permute.xlu0 %1520
        %1522 = vrot.lane.b32.xlu0 %v703, 80
        %v1523 = vpop.permute.xlu0 %1522
        %1524 = vrot.lane.b32.xlu0 %v791, 80
        %v1525 = vpop.permute.xlu0 %1524
        %v1526 = vsel %vm885, %v1521, 0
        %v1528 = vsel %vm885, %v1523, 0
        %v1530 = vsel %vm885, %v1525, 0
        %1532 = vmatprep.subr.mxu0 0.0
        %1533 = vmatpush1.xpose.msra.mxu0 %v1530
        %1534 = vmatprep.subr.mxu0 0.0
        %1535 = vmatpush1.xpose.msra.mxu0 0.0
        %1536 = vmatprep.subr.mxu0 0.0
        %1537 = vmatpush1.xpose.msra.mxu0 0.0
        %1538 = vmatprep.subr.mxu0 0.0
        %1539 = vmatpush1.xpose.msra.mxu0 0.0
        %1540 = vmatprep.subr.mxu0 0.0
        %1541 = vmatpush1.xpose.msra.mxu0 0.0
        %1542 = vmatprep.subr.mxu0 0.0
        %1543 = vmatpush1.xpose.msra.mxu0 0.0
        %1544 = vmatprep.subr.mxu0 0.0
        %1545 = vmatpush1.xpose.msra.mxu0 0.0
        %1546 = vmatprep.subr.mxu0 0.0
        %1547 = vmatpush1.xpose.msra.mxu0 0.0
        %1548 = vmatprep.subr.mxu0 0.0
        %1549 = vmatpush1.xpose.msra.mxu0 0.0
        %1550 = vmatprep.subr.mxu0 0.0
        %1551 = vmatpush1.xpose.msra.mxu0 0.0
        %1552 = vmatprep.subr.mxu0 0.0
        %1553 = vmatpush1.xpose.msra.mxu0 0.0
        %1554 = vmatprep.subr.mxu0 0.0
        %1555 = vmatpush1.xpose.msra.mxu0 0.0
        %1556 = vmatprep.subr.mxu0 0.0
        %1557 = vmatpush1.xpose.msra.mxu0 0.0
        %1558 = vmatprep.subr.mxu0 0.0
        %1559 = vmatpush1.xpose.msra.mxu0 0.0
        %1560 = vmatprep.subr.mxu0 0.0
        %1561 = vmatpush1.xpose.msra.mxu0 0.0
        %1562 = vmatprep.subr.mxu0 0.0
        %1563 = vmatpush1.xpose.msra.mxu0 0.0
        %1564 = vmatprep.subr.mxu0 0.0
        %1565 = vmatpush1.xpose.msra.mxu0 0.0
        %1566 = vmatprep.subr.mxu0 0.0
        %1567 = vmatpush1.xpose.msra.mxu0 0.0
        %1568 = vmatprep.subr.mxu0 0.0
        %1569 = vmatpush1.xpose.msra.mxu0 0.0
        %1570 = vmatprep.subr.mxu0 0.0
        %1571 = vmatpush1.xpose.msra.mxu0 0.0
        %1572 = vmatprep.subr.mxu0 0.0
        %1573 = vmatpush1.xpose.msra.mxu0 0.0
        %1574 = vmatprep.subr.mxu0 0.0
        %1575 = vmatpush1.xpose.msra.mxu0 0.0
        %1576 = vmatprep.subr.mxu0 0.0
        %1577 = vmatpush1.xpose.msra.mxu0 0.0
        %1578 = vmatprep.subr.mxu0 0.0
        %1579 = vmatpush1.xpose.msra.mxu0 0.0
        %1580 = vmatprep.subr.mxu0 0.0
        %1581 = vmatpush1.xpose.msra.mxu0 0.0
        %1582 = vmatprep.subr.mxu0 0.0
        %1583 = vmatpush1.xpose.msra.mxu0 0.0
        %1584 = vmatprep.subr.mxu0 0.0
        %1585 = vmatpush1.xpose.msra.mxu0 0.0
        %1586 = vmatprep.subr.mxu0 0.0
        %1587 = vmatpush1.xpose.msra.mxu0 0.0
        %1588 = vmatprep.subr.mxu0 0.0
        %1589 = vmatpush1.xpose.msra.mxu0 0.0
        %1590 = vmatprep.subr.mxu0 0.0
        %1591 = vmatpush1.xpose.msra.mxu0 0.0
        %1592 = vmatprep.subr.mxu0 0.0
        %1593 = vmatpush1.xpose.msra.mxu0 0.0
        %1594 = vmatprep.subr.mxu0 0.0
        %1595 = vmatpush1.xpose.msra.mxu0 0.0
        %1596 = vmatprep.mubr.f32.mxu0 0.0
        %1597 = vmatmul.mubr.f32.gmra.mrb[0].mxu0 %v1526
        %v1598 = vpop.f32.mrb[0].mxu0
        %v1599 = vadd.f32 0.0, %v1598
        %v1600 = vpop.f32.mrb[0].mxu0
        %1601 = vmatprep.mubr.f32.mxu0 0.0
        %1602 = vmatmul.mubr.f32.gmra.mrb[0].mxu0 %v1528
        %v1603 = vpop.f32.mrb[0].mxu0
        %v1604 = vadd.f32 0.0, %v1603
        %v1605 = vpop.f32.mrb[0].mxu0
        %1606 = vdwg.mxu0
        %v1607 = vsel %vm882, %v1599, -inf
        %1608 = vmax.xlane.f32.xlu0 %v1607
        %v1609 = vpop.xlane.xlu0 %1608
        %v1610 = vsel %vm882, %v1604, -inf
        %1611 = vmax.xlane.f32.xlu0 %v1610
        %v1612 = vpop.xlane.xlu0 %1611
        %v1613 = vsub.f32 %v1599, %v1609
        %v1614 = vsub.f32 %v1604, %v1612
        %v1615 = vmul.f32 %v1613, 1.442695
        %v1616 = vpow.pop %v1615
        %v1617 = vmul.f32 %v1614, 1.442695
        %v1618 = vpow.pop %v1617
        %v1619 = vsel %vm882, %v1616, 0.0
        %1620 = vadd.xlane.f32.xlu0 %v1619
        %v1621 = vpop.xlane.xlu0 %1620
        %v1622 = vsel %vm882, %v1618, 0.0
        %1623 = vadd.xlane.f32.xlu0 %v1622
        %v1624 = vpop.xlane.xlu0 %1623
        %v1625 = vrcp.pop %v1621
        %v1626 = vrcp.pop %v1624
        %v1627 = vmul.f32 %v1621, %v1625
        %v1628 = vmul.f32 %v1624, %v1626
        %v1629 = vsub.f32 2.0, %v1627
        %v1630 = vsub.f32 2.0, %v1628
        %v1631 = vmul.f32 %v1625, %v1629
        %v1632 = vmul.f32 %v1626, %v1630
        %v1633 = vmul.f32 %v1616, %v1631
        %v1634 = vmul.f32 %v1618, %v1632
        %v1635 = vld [vmem:[#allocation3] sm:$0xff]
        %v1636 = vld [vmem:[#allocation3 + $0x8] sm:$0xff]
        %v1637 = vadd.f32 %v1635, %v1633
        %v1638 = vadd.f32 %v1636, %v1634
        %1639 = vst.msk [vmem:[#allocation3] sm:$0xff] %vm882, %v1637
        %1640 = vst.msk [vmem:[#allocation3 + $0x8] sm:$0xff] %vm882, %v1638
        %1641 = vrot.lane.b32.xlu0 %v879, 80
        %v1642 = vpop.permute.xlu0 %1641
        %v1645 = vsel %vm882, %v1633, 0
        %v1648 = vsel %vm882, %v1634, 0
        %1650 = vmatprep.subr.mxu0 0.0
        %1651 = vmatpush1.msra.mxu0 %v1642
        %1652 = vmatprep.subr.mxu0 0.0
        %1653 = vmatpush1.msra.mxu0 0.0
        %1654 = vmatprep.subr.mxu0 0.0
        %1655 = vmatpush1.msra.mxu0 0.0
        %1656 = vmatprep.subr.mxu0 0.0
        %1657 = vmatpush1.msra.mxu0 0.0
        %1658 = vmatprep.subr.mxu0 0.0
        %1659 = vmatpush1.msra.mxu0 0.0
        %1660 = vmatprep.subr.mxu0 0.0
        %1661 = vmatpush1.msra.mxu0 0.0
        %1662 = vmatprep.subr.mxu0 0.0
        %1663 = vmatpush1.msra.mxu0 0.0
        %1664 = vmatprep.subr.mxu0 0.0
        %1665 = vmatpush1.msra.mxu0 0.0
        %1666 = vmatprep.subr.mxu0 0.0
        %1667 = vmatpush1.msra.mxu0 0.0
        %1668 = vmatprep.subr.mxu0 0.0
        %1669 = vmatpush1.msra.mxu0 0.0
        %1670 = vmatprep.subr.mxu0 0.0
        %1671 = vmatpush1.msra.mxu0 0.0
        %1672 = vmatprep.subr.mxu0 0.0
        %1673 = vmatpush1.msra.mxu0 0.0
        %1674 = vmatprep.subr.mxu0 0.0
        %1675 = vmatpush1.msra.mxu0 0.0
        %1676 = vmatprep.subr.mxu0 0.0
        %1677 = vmatpush1.msra.mxu0 0.0
        %1678 = vmatprep.subr.mxu0 0.0
        %1679 = vmatpush1.msra.mxu0 0.0
        %1680 = vmatprep.subr.mxu0 0.0
        %1681 = vmatpush1.msra.mxu0 0.0
        %1682 = vmatprep.subr.mxu0 0.0
        %1683 = vmatpush1.msra.mxu0 0.0
        %1684 = vmatprep.subr.mxu0 0.0
        %1685 = vmatpush1.msra.mxu0 0.0
        %1686 = vmatprep.subr.mxu0 0.0
        %1687 = vmatpush1.msra.mxu0 0.0
        %1688 = vmatprep.subr.mxu0 0.0
        %1689 = vmatpush1.msra.mxu0 0.0
        %1690 = vmatprep.subr.mxu0 0.0
        %1691 = vmatpush1.msra.mxu0 0.0
        %1692 = vmatprep.subr.mxu0 0.0
        %1693 = vmatpush1.msra.mxu0 0.0
        %1694 = vmatprep.subr.mxu0 0.0
        %1695 = vmatpush1.msra.mxu0 0.0
        %1696 = vmatprep.subr.mxu0 0.0
        %1697 = vmatpush1.msra.mxu0 0.0
        %1698 = vmatprep.subr.mxu0 0.0
        %1699 = vmatpush1.msra.mxu0 0.0
        %1700 = vmatprep.subr.mxu0 0.0
        %1701 = vmatpush1.msra.mxu0 0.0
        %1702 = vmatprep.subr.mxu0 0.0
        %1703 = vmatpush1.msra.mxu0 0.0
        %1704 = vmatprep.subr.mxu0 0.0
        %1705 = vmatpush1.msra.mxu0 0.0
        %1706 = vmatprep.subr.mxu0 0.0
        %1707 = vmatpush1.msra.mxu0 0.0
        %1708 = vmatprep.subr.mxu0 0.0
        %1709 = vmatpush1.msra.mxu0 0.0
        %1710 = vmatprep.subr.mxu0 0.0
        %1711 = vmatpush1.msra.mxu0 0.0
        %1712 = vmatprep.subr.mxu0 0.0
        %1713 = vmatpush1.msra.mxu0 0.0
        %1714 = vmatprep.mubr.f32.mxu0 0.0
        %1715 = vmatmul.mubr.f32.gmra.mrb[0].mxu0 %v1645
        %v1716 = vpop.f32.mrb[0].mxu0
        %v1717 = vadd.f32 0.0, %v1716
        %v1718 = vpop.f32.mrb[0].mxu0
        %1719 = vmatprep.mubr.f32.mxu0 0.0
        %1720 = vmatmul.mubr.f32.gmra.mrb[0].mxu0 %v1648
        %v1721 = vpop.f32.mrb[0].mxu0
        %v1722 = vadd.f32 0.0, %v1721
        %v1723 = vpop.f32.mrb[0].mxu0
        %1724 = vdwg.mxu0
        %1727 = vrot.lane.b32.xlu0 %v1717, 48
        %v1728 = vpop.permute.xlu0 %1727
        %1729 = vrot.lane.b32.xlu0 %v1722, 48
        %v1730 = vpop.permute.xlu0 %1729
        %vm1733 = vcmask 523648
        %1734 = vst.msk [vmem:[#allocation2] sm:$0xff] %vm1733, %v1728
        %1735 = vst.msk [vmem:[#allocation2 + $0x8] sm:$0xff] %vm1733, %v1730
        %v1736 = vld [vmem:[#allocation2] sm:$0xff]
        %v1737 = vld [vmem:[#allocation2 + $0x8] sm:$0xff]
        %v1738 = vld [vmem:[#allocation15] sm:$0xff]
        %v1739 = vld [vmem:[#allocation15 + $0x8] sm:$0xff]
        %v1740 = vld [vmem:[#allocation15 + $0x10] sm:$0xff]
        %v1741 = vld [vmem:[#allocation15 + $0x18] sm:$0xff]
        %v1742 = vld [vmem:[#allocation15 + $0x20] sm:$0xff]
        %v1743 = vld [vmem:[#allocation15 + $0x28] sm:$0xff]
        %v1744 = vld [vmem:[#allocation15 + $0x30] sm:$0xff]
        %v1745 = vld [vmem:[#allocation15 + $0x38] sm:$0xff]
        %v1746 = vld [vmem:[%s10] sm:$0x1]
        %v1748 = vlaneseq
        %v1749 = vshrl.u32 %v1748, 7
        %v1750 = vsub.s32 0, %v1749
        %v1751 = vrot.slane %v1746, %v1750
        %v1754 = vsel %vm624, %v1736, 0
        %v1757 = vsel %vm624, %v1737, 0
        %1759 = vmatprep.subr.mxu0 0.0
        %1760 = vmatpush1.msra.mxu0 %v1738
        %1761 = vmatprep.subr.mxu0 0.0
        %1762 = vmatpush1.msra.mxu0 %v1739
        %1763 = vmatprep.subr.mxu0 0.0
        %1764 = vmatpush1.msra.mxu0 %v1740
        %1765 = vmatprep.subr.mxu0 0.0
        %1766 = vmatpush1.msra.mxu0 %v1741
        %1767 = vmatprep.subr.mxu0 0.0
        %1768 = vmatpush1.msra.mxu0 %v1742
        %1769 = vmatprep.subr.mxu0 0.0
        %1770 = vmatpush1.msra.mxu0 %v1743
        %1771 = vmatprep.subr.mxu0 0.0
        %1772 = vmatpush1.msra.mxu0 %v1744
        %1773 = vmatprep.subr.mxu0 0.0
        %1774 = vmatpush1.msra.mxu0 %v1745
        %1775 = vmatprep.subr.mxu0 0.0
        %1776 = vmatpush1.msra.mxu0 0.0
        %1777 = vmatprep.subr.mxu0 0.0
        %1778 = vmatpush1.msra.mxu0 0.0
        %1779 = vmatprep.subr.mxu0 0.0
        %1780 = vmatpush1.msra.mxu0 0.0
        %1781 = vmatprep.subr.mxu0 0.0
        %1782 = vmatpush1.msra.mxu0 0.0
        %1783 = vmatprep.subr.mxu0 0.0
        %1784 = vmatpush1.msra.mxu0 0.0
        %1785 = vmatprep.subr.mxu0 0.0
        %1786 = vmatpush1.msra.mxu0 0.0
        %1787 = vmatprep.subr.mxu0 0.0
        %1788 = vmatpush1.msra.mxu0 0.0
        %1789 = vmatprep.subr.mxu0 0.0
        %1790 = vmatpush1.msra.mxu0 0.0
        %1791 = vmatprep.subr.mxu0 0.0
        %1792 = vmatpush1.msra.mxu0 0.0
        %1793 = vmatprep.subr.mxu0 0.0
        %1794 = vmatpush1.msra.mxu0 0.0
        %1795 = vmatprep.subr.mxu0 0.0
        %1796 = vmatpush1.msra.mxu0 0.0
        %1797 = vmatprep.subr.mxu0 0.0
        %1798 = vmatpush1.msra.mxu0 0.0
        %1799 = vmatprep.subr.mxu0 0.0
        %1800 = vmatpush1.msra.mxu0 0.0
        %1801 = vmatprep.subr.mxu0 0.0
        %1802 = vmatpush1.msra.mxu0 0.0
        %1803 = vmatprep.subr.mxu0 0.0
        %1804 = vmatpush1.msra.mxu0 0.0
        %1805 = vmatprep.subr.mxu0 0.0
        %1806 = vmatpush1.msra.mxu0 0.0
        %1807 = vmatprep.subr.mxu0 0.0
        %1808 = vmatpush1.msra.mxu0 0.0
        %1809 = vmatprep.subr.mxu0 0.0
        %1810 = vmatpush1.msra.mxu0 0.0
        %1811 = vmatprep.subr.mxu0 0.0
        %1812 = vmatpush1.msra.mxu0 0.0
        %1813 = vmatprep.subr.mxu0 0.0
        %1814 = vmatpush1.msra.mxu0 0.0
        %1815 = vmatprep.subr.mxu0 0.0
        %1816 = vmatpush1.msra.mxu0 0.0
        %1817 = vmatprep.subr.mxu0 0.0
        %1818 = vmatpush1.msra.mxu0 0.0
        %1819 = vmatprep.subr.mxu0 0.0
        %1820 = vmatpush1.msra.mxu0 0.0
        %1821 = vmatprep.subr.mxu0 0.0
        %1822 = vmatpush1.msra.mxu0 0.0
        %1823 = vmatprep.mubr.f32.mxu0 0.0
        %1824 = vmatmul.mubr.f32.gmra.mrb[0].mxu0 %v1754
        %v1825 = vpop.f32.mrb[0].mxu0
        %v1826 = vadd.f32 %v1751, %v1825
        %v1827 = vpop.f32.mrb[0].mxu0
        %1828 = vmatprep.mubr.f32.mxu0 0.0
        %1829 = vmatmul.mubr.f32.gmra.mrb[0].mxu0 %v1757
        %v1830 = vpop.f32.mrb[0].mxu0
        %v1831 = vadd.f32 %v1751, %v1830
        %v1832 = vpop.f32.mrb[0].mxu0
        %1833 = vdwg.mxu0
        %1834 = vst.msk [vmem:[%s581] sm:$0xff] %vm624, %v1826
        %1835 = vst.msk [vmem:[%s581 + $0x8] sm:$0xff] %vm624, %v1831
        %v1836 = vld [vmem:[#allocation3] sm:$0xff]
        %v1837 = vld [vmem:[#allocation3 + $0x8] sm:$0xff]
        %v1838 = vmul.f32 %v1836, 0.25
        %v1839 = vmul.f32 %v1837, 0.25
        %1840 = vst.msk [vmem:[%s603] sm:$0xff] %vm882, %v1838
        %1841 = vst.msk [vmem:[%s603 + $0x8] sm:$0xff] %vm882, %v1839
        %s1842 = sand.u32 %s305, 1
        %s1843 = scalar_lea.sflag [#allocation6], %s1842
        %s1844 = sand.u32 %s305, 1
        %s1845 = smul.addr %s1844, 16
        %s1846 = scalar_lea.vmem [#allocation16], %s1845
        %s1847 = smul.u32 2, %s40
        %p1848 = scmp.lt.s32.totalorder %s39, 1
        %s1849 = scalar_select %p1848, %s39, 1
        %p1850 = scmp.lt.s32.totalorder %s1847, 1
        %s1851 = scalar_select %p1850, %s1847, 1
        %s1852 = smul.addr %s1849, 2
        %s1853 = sadd.s32 %s1851, %s1852
        %s1854 = smul.addr %s1853, 8
        %s1855 = scalar_lea.vmem %s12, %s1854
        // Predicated region
        $region93: #{tpu_custom_call.1} parent=63 // pred_check
          %p1856 = pneg %p315
        $region94: #{tpu_custom_call.1} parent=63 // pred_check_branch
          %1858 = sbr.rel (%p1856) target = $region96
        $region95: #{tpu_custom_call.1} parent=63 // pred_region
          %s1859 = smul.u32 2, %s40
          %s1861 = ssub.s32 256, 256
          %1862 = vsyncadd %s1843, %s1861
          %s1863 = smul.addr %s39, 2
          %s1864 = sadd.s32 %s1859, %s1863
          %s1865 = smul.addr %s1864, 128
          %s1866 = scalar_lea.hbm %s11, %s1865
          %s1867 = sshll.u32 %s1846, 4
          %s1868 = int_to_ptr.vmem [resolvable:$true] %s1867
          %1873 = dma.vmem_to_hbm [thread:$0]  %s1868, 256, %s1866, %s1843, 128, 128, 8
        $region96: #{tpu_custom_call.1} parent=63 // pred_fallthru
          _
        // Predicated region
        $region97: #{tpu_custom_call.1} parent=63 // pred_check
          %p1874 = pneg %p343
        $region98: #{tpu_custom_call.1} parent=63 // pred_check_branch
          %1876 = sbr.rel (%p1874) target = $region100
        $region99: #{tpu_custom_call.1} parent=63 // pred_region
          %s1877 = smul.u32 2, %s40
        $region100: #{tpu_custom_call.1} parent=63 // pred_fallthru
          _
      $region64: #{tpu_custom_call.1} parent=5 // pred_fallthru
        _
      %p1878 = scmp.le.s32.totalorder 2, %s30
      // Predicated region
      $region101: #{tpu_custom_call.1} parent=5 // pred_check
        %p1879 = pneg %p1878
      $region102: #{tpu_custom_call.1} parent=5 // pred_check_branch
        %1881 = sbr.rel (%p1879) target = $region104
      $region103: #{tpu_custom_call.1} parent=5 // pred_region
        %s1882 = ssub.s32 %s30, 2
        // Predicated region
        $region105: #{tpu_custom_call.1} parent=103 // pred_check
          %p1883 = pneg %p321
        $region106: #{tpu_custom_call.1} parent=103 // pred_check_branch
          %1885 = sbr.rel (%p1883) target = $region108
        $region107: #{tpu_custom_call.1} parent=103 // pred_region
          %s1886 = sand.u32 %s306, 1
          %s1887 = scalar_lea.sflag [#allocation6], %s1886
          %s1888 = sand.u32 %s306, 1
          %s1889 = smul.addr %s1888, 16
          %s1890 = scalar_lea.vmem [#allocation16], %s1889
          %1891 = dma.done %s1887, 256
        $region108: #{tpu_custom_call.1} parent=103 // pred_fallthru
          _
        // Predicated region
        $region109: #{tpu_custom_call.1} parent=103 // pred_check
          %p1892 = pneg %p349
        $region110: #{tpu_custom_call.1} parent=103 // pred_check_branch
          %1894 = sbr.rel (%p1892) target = $region112
        $region111: #{tpu_custom_call.1} parent=103 // pred_region
          %s1895 = smul.u32 2, %s42
          %p1896 = scmp.lt.s32.totalorder %s41, 1
          %s1897 = scalar_select %p1896, %s41, 1
          %p1898 = scmp.lt.s32.totalorder %s1895, 1
          %s1899 = scalar_select %p1898, %s1895, 1
          %s1900 = smul.addr %s1897, 2
          %s1901 = sadd.s32 %s1899, %s1900
          %s1902 = smul.addr %s1901, 8
          %s1903 = scalar_lea.vmem %s12, %s1902
        $region112: #{tpu_custom_call.1} parent=103 // pred_fallthru
          _
      $region104: #{tpu_custom_call.1} parent=5 // pred_fallthru
        _
    $region6: #{tpu_custom_call.1} parent=1 // loop_footer
      %s34 = sadd.s32 1, %s30
    $region7: #{tpu_custom_call.1} parent=1 // loop_footer_branch
      %29 = sbr.rel target = $region3
    $region8: #{tpu_custom_call.1} parent=1 // loop_exit
      _
    %1904 = vsyncpa [#allocation5], 1
    %s1905 = scalar_lea.sflag [#allocation5], 1
    %1906 = vsyncpa %s1905, 1
    %1907 = vsyncpa [#allocation8], 1
    %s1908 = scalar_lea.sflag [#allocation8], 1
    %1909 = vsyncpa %s1908, 1
    %1910 = vsyncpa [#allocation11], 1
    %1911 = vsyncpa [#allocation14], 1
    %1912 = vsyncpa [#allocation6], 1
    %s1913 = scalar_lea.sflag [#allocation6], 1
    %1914 = vsyncpa %s1913, 1

</llo_original>
